<compile_context>
chip_gen: v7x
topology: tpu7x:2x2x1
jax: 0.10.0
libtpu: 0.0.40
codegen_flags: <defaults>
</compile_context>

<pallas_src>
import functools
import math

import jax
import jax.numpy as jnp
from jax import lax
from jax.experimental import pallas as pl
from jax.experimental.pallas import tpu as pltpu

_LN_EPS = 1e-5
_NEG = -1e30  # finite large-negative (robust softmax masking)
_VMEM_LIMIT = 32 * 1024 * 1024


# ----------------------------------------------------------------------------
# In-kernel building blocks (pure jnp on VMEM-resident values)
# ----------------------------------------------------------------------------
def _layernorm(x, g, b, eps=_LN_EPS):
    mu = jnp.mean(x, axis=-1, keepdims=True)
    var = jnp.mean(jnp.square(x - mu), axis=-1, keepdims=True)
    return (x - mu) * lax.rsqrt(var + eps) * g + b


def _mha(q, k, v, *, nhead, mask_bias=None):
    """Single batch element. q: (Tq,E) f32, k/v: (Tk,E) f32 -> (Tq,E) f32."""
    Tq, E = q.shape
    Tk = k.shape[0]
    dk = E // nhead
    scale = 1.0 / math.sqrt(dk)
    if nhead == 1:
        qs = (q * scale).astype(jnp.bfloat16)
        kb = k.astype(jnp.bfloat16)
        s = lax.dot_general(qs, kb, (((1,), (1,)), ((), ())),
                            preferred_element_type=jnp.float32)
        if mask_bias is not None:
            s = s + mask_bias
        m = jnp.max(s, axis=-1, keepdims=True)
        p = jnp.exp(s - m)
        p = p * pl.reciprocal(jnp.sum(p, axis=-1, keepdims=True), approx=True)
        return jnp.dot(p.astype(jnp.bfloat16), v.astype(jnp.bfloat16),
                       preferred_element_type=jnp.float32)
    # head-batched path (single einsum per stage; no per-head slicing / concat)
    qh = (q * scale).reshape(Tq, nhead, dk).astype(jnp.bfloat16)
    kh = k.reshape(Tk, nhead, dk).astype(jnp.bfloat16)
    vh = v.reshape(Tk, nhead, dk).astype(jnp.bfloat16)
    s = jnp.einsum('qhd,khd->hqk', qh, kh, preferred_element_type=jnp.float32)
    if mask_bias is not None:
        s = s + mask_bias[None]
    m = jnp.max(s, axis=-1, keepdims=True)
    p = jnp.exp(s - m)
    p = p * pl.reciprocal(jnp.sum(p, axis=-1, keepdims=True), approx=True)
    o = jnp.einsum('hqk,khd->qhd', p.astype(jnp.bfloat16), vh,
                   preferred_element_type=jnp.float32)
    return o.reshape(Tq, E)


def _proj(x_bf16, w_ref, b_ref):
    return jnp.dot(x_bf16, w_ref[0], preferred_element_type=jnp.float32) + b_ref[0]


# ----------------------------------------------------------------------------
# Encoder: grid = (batch, enc_layers); carry in VMEM scratch; final norm fused.
# ----------------------------------------------------------------------------
def _encoder_layer_kernel(x_ref, wq_ref, wk_ref, wv_ref, bq_ref, bk_ref, bv_ref,
                          wo_ref, bo_ref, n1g_ref, n1b_ref,
                          w1_ref, b1_ref, w2_ref, b2_ref, n2g_ref, n2b_ref,
                          fg_ref, fb_ref, o_ref, xc_ref, *, nhead):
    l = pl.program_id(1)
    last = pl.num_programs(1) - 1

    @pl.when(l == 0)
    def _():
        xc_ref[...] = x_ref[...]

    x = xc_ref[...]                                   # (S, E) f32 carry
    xb = x.astype(jnp.bfloat16)
    q = _proj(xb, wq_ref, bq_ref)
    k = _proj(xb, wk_ref, bk_ref)
    v = _proj(xb, wv_ref, bv_ref)
    a = _mha(q, k, v, nhead=nhead)
    a = _proj(a.astype(jnp.bfloat16), wo_ref, bo_ref)
    x = _layernorm(x + a, n1g_ref[0], n1b_ref[0])
    h = jnp.maximum(_proj(x.astype(jnp.bfloat16), w1_ref, b1_ref), 0.0)
    h = _proj(h.astype(jnp.bfloat16), w2_ref, b2_ref)
    x = _layernorm(x + h, n2g_ref[0], n2b_ref[0])
    xc_ref[...] = x

    @pl.when(l == last)
    def _():
        o_ref[...] = _layernorm(x, fg_ref[...], fb_ref[...])


def encoder_stack(x2d, ep, fg, fb, *, B, S, E, nhead):
    L = ep['wq'].shape[0]
    F = ep['w1'].shape[-1]
    kern = functools.partial(_encoder_layer_kernel, nhead=nhead)

    def layer_w(dims):
        return pl.BlockSpec((1,) + dims, lambda b, l, _d=dims: (l,) + (0,) * len(_d))

    def const(shape):
        return pl.BlockSpec(shape, lambda b, l, _s=shape: (0,) * len(_s))

    grid_spec = pltpu.PrefetchScalarGridSpec(
        num_scalar_prefetch=0,
        grid=(B, L),
        in_specs=[
            pl.BlockSpec((S, E), lambda b, l: (b, 0)),           # x
            layer_w((E, E)), layer_w((E, E)), layer_w((E, E)),   # wq wk wv
            layer_w((1, E)), layer_w((1, E)), layer_w((1, E)),   # bq bk bv
            layer_w((E, E)), layer_w((1, E)),                    # wo bo
            layer_w((1, E)), layer_w((1, E)),                    # n1g n1b
            layer_w((E, F)), layer_w((1, F)),                    # w1 b1
            layer_w((F, E)), layer_w((1, E)),                    # w2 b2
            layer_w((1, E)), layer_w((1, E)),                    # n2g n2b
            const((1, E)), const((1, E)),                        # fg fb
        ],
        out_specs=pl.BlockSpec((S, E), lambda b, l: (b, 0)),
        scratch_shapes=[pltpu.VMEM((S, E), jnp.float32)],
    )
    return pl.pallas_call(
        kern,
        grid_spec=grid_spec,
        out_shape=jax.ShapeDtypeStruct((B * S, E), jnp.float32),
        compiler_params=pltpu.CompilerParams(
            dimension_semantics=("parallel", "arbitrary"),
            vmem_limit_bytes=_VMEM_LIMIT),
    )(x2d, ep['wq'], ep['wk'], ep['wv'], ep['bq'], ep['bk'], ep['bv'],
      ep['wo'], ep['bo'], ep['n1g'], ep['n1b'],
      ep['w1'], ep['b1'], ep['w2'], ep['b2'], ep['n2g'], ep['n2b'],
      fg, fb)


# ----------------------------------------------------------------------------
# Decoder: grid = (batch, dec_layers); carry in VMEM scratch;
# final norm + lane-dense padded fc_out fused into the last layer step.
# ----------------------------------------------------------------------------
def _decoder_layer_kernel(mask_ref, x_ref, mem_ref,
                          sa_wq_ref, sa_wk_ref, sa_wv_ref,
                          sa_bq_ref, sa_bk_ref, sa_bv_ref,
                          sa_wo_ref, sa_bo_ref, n1g_ref, n1b_ref,
                          ca_wq_ref, ca_wk_ref, ca_wv_ref,
                          ca_bq_ref, ca_bk_ref, ca_bv_ref,
                          ca_wo_ref, ca_bo_ref, n2g_ref, n2b_ref,
                          w1_ref, b1_ref, w2_ref, b2_ref, n3g_ref, n3b_ref,
                          fg_ref, fb_ref, fcw_ref, fcb_ref,
                          o_ref, xc_ref, *, nhead):
    l = pl.program_id(1)
    last = pl.num_programs(1) - 1

    @pl.when(l == 0)
    def _():
        xc_ref[...] = x_ref[...]

    x = xc_ref[...]                                   # (T, E) f32 carry
    mask = mask_ref[...]                              # (T, T) additive causal bias
    mem_b = mem_ref[...].astype(jnp.bfloat16)         # (S, E)

    # masked (causal) self-attention
    xb = x.astype(jnp.bfloat16)
    q = _proj(xb, sa_wq_ref, sa_bq_ref)
    k = _proj(xb, sa_wk_ref, sa_bk_ref)
    v = _proj(xb, sa_wv_ref, sa_bv_ref)
    a = _mha(q, k, v, nhead=nhead, mask_bias=mask)
    a = _proj(a.astype(jnp.bfloat16), sa_wo_ref, sa_bo_ref)
    x = _layernorm(x + a, n1g_ref[0], n1b_ref[0])

    # cross-attention over encoder memory
    xb = x.astype(jnp.bfloat16)
    q = _proj(xb, ca_wq_ref, ca_bq_ref)
    k = _proj(mem_b, ca_wk_ref, ca_bk_ref)
    v = _proj(mem_b, ca_wv_ref, ca_bv_ref)
    a = _mha(q, k, v, nhead=nhead)
    a = _proj(a.astype(jnp.bfloat16), ca_wo_ref, ca_bo_ref)
    x = _layernorm(x + a, n2g_ref[0], n2b_ref[0])

    # feed-forward
    h = jnp.maximum(_proj(x.astype(jnp.bfloat16), w1_ref, b1_ref), 0.0)
    h = _proj(h.astype(jnp.bfloat16), w2_ref, b2_ref)
    x = _layernorm(x + h, n3g_ref[0], n3b_ref[0])
    xc_ref[...] = x

    @pl.when(l == last)
    def _():
        xf = _layernorm(x, fg_ref[...], fb_ref[...])
        o_ref[...] = jnp.dot(xf.astype(jnp.bfloat16), fcw_ref[...],
                             preferred_element_type=jnp.float32) + fcb_ref[...]


def decoder_stack(mask, x2d, mem2d, dp, fg, fb, fcw, fcb, *, B, T, S, E, nhead):
    L = dp['sa_wq'].shape[0]
    F = dp['w1'].shape[-1]
    P = fcw.shape[1]
    kern = functools.partial(_decoder_layer_kernel, nhead=nhead)

    def layer_w(dims):
        return pl.BlockSpec((1,) + dims, lambda b, l, _d=dims: (l,) + (0,) * len(_d))

    def const(shape):
        return pl.BlockSpec(shape, lambda b, l, _s=shape: (0,) * len(_s))

    grid_spec = pltpu.PrefetchScalarGridSpec(
        num_scalar_prefetch=0,
        grid=(B, L),
        in_specs=[
            const((T, T)),                                       # causal mask bias
            pl.BlockSpec((T, E), lambda b, l: (b, 0)),           # tgt embeddings
            pl.BlockSpec((S, E), lambda b, l: (b, 0)),           # encoder memory
            layer_w((E, E)), layer_w((E, E)), layer_w((E, E)),   # sa_wq wk wv
            layer_w((1, E)), layer_w((1, E)), layer_w((1, E)),   # sa_bq bk bv
            layer_w((E, E)), layer_w((1, E)),                    # sa_wo bo
            layer_w((1, E)), layer_w((1, E)),                    # n1g n1b
            layer_w((E, E)), layer_w((E, E)), layer_w((E, E)),   # ca_wq wk wv
            layer_w((1, E)), layer_w((1, E)), layer_w((1, E)),   # ca_bq bk bv
            layer_w((E, E)), layer_w((1, E)),                    # ca_wo bo
            layer_w((1, E)), layer_w((1, E)),                    # n2g n2b
            layer_w((E, F)), layer_w((1, F)),                    # w1 b1
            layer_w((F, E)), layer_w((1, E)),                    # w2 b2
            layer_w((1, E)), layer_w((1, E)),                    # n3g n3b
            const((1, E)), const((1, E)),                        # fg fb
            const((E, P)), const((1, P)),                        # fc_out w/b (padded)
        ],
        out_specs=pl.BlockSpec((T, P), lambda b, l: (b, 0)),
        scratch_shapes=[pltpu.VMEM((T, E), jnp.float32)],
    )
    return pl.pallas_call(
        kern,
        grid_spec=grid_spec,
        out_shape=jax.ShapeDtypeStruct((B * T, P), jnp.float32),
        compiler_params=pltpu.CompilerParams(
            dimension_semantics=("parallel", "arbitrary"),
            vmem_limit_bytes=_VMEM_LIMIT),
    )(mask, x2d, mem2d,
      dp['sa_wq'], dp['sa_wk'], dp['sa_wv'],
      dp['sa_bq'], dp['sa_bk'], dp['sa_bv'],
      dp['sa_wo'], dp['sa_bo'], dp['n1g'], dp['n1b'],
      dp['ca_wq'], dp['ca_wk'], dp['ca_wv'],
      dp['ca_bq'], dp['ca_bk'], dp['ca_bv'],
      dp['ca_wo'], dp['ca_bo'], dp['n2g'], dp['n2b'],
      dp['w1'], dp['b1'], dp['w2'], dp['b2'], dp['n3g'], dp['n3b'],
      fg, fb, fcw, fcb)


# ----------------------------------------------------------------------------
# Full forward (embedding gather / positional-encoding add kept as XLA glue)
# ----------------------------------------------------------------------------
def transformer_forward(params, src, tgt):
    S, B, E = src.shape
    T = tgt.shape[0]
    nhead = params['nhead']
    out_dim = params['out_dim']

    # PositionalEncoding: x + scale * pe  (dropout = identity at inference)
    src = src + params['pe_enc_scale'] * params['pe_enc'][:S]
    # TODO(synk): embedding gather stays in plain JAX (no cheap Pallas gather here)
    tgt_e = params['dec_emb'][tgt] + params['pe_dec_scale'] * params['pe_dec'][:T]

    # batch-major 2-D slabs for the fused kernels
    src_bm = src.transpose(1, 0, 2).reshape(B * S, E)
    tgt_bm = tgt_e.transpose(1, 0, 2).reshape(B * T, E)

    # causal mask bias built ONCE (hoisted out of all layers/heads)
    row = jnp.arange(T, dtype=jnp.int32)[:, None]
    col = jnp.arange(T, dtype=jnp.int32)[None, :]
    tgt_mask = jnp.where(col > row, _NEG, 0.0).astype(jnp.float32)

    memory = encoder_stack(src_bm, params['enc'], params['enc_norm_g'],
                           params['enc_norm_b'], B=B, S=S, E=E, nhead=nhead)
    y = decoder_stack(tgt_mask, tgt_bm, memory, params['dec'],
                      params['dec_norm_g'], params['dec_norm_b'],
                      params['fc_out_w'], params['fc_out_b'],
                      B=B, T=T, S=S, E=E, nhead=nhead)
    # un-pad fc_out and return to (T, B, out_dim) seq-major layout
    return y[:, :out_dim].reshape(B, T, out_dim).transpose(1, 0, 2)


# ----------------------------------------------------------------------------
# Deterministic parameter init (synthetic; shapes from module __init__)
# ----------------------------------------------------------------------------
def make_pe(max_len, d_model):
    position = jnp.arange(max_len, dtype=jnp.float32)[:, None]
    div_term = jnp.exp(jnp.arange(0, d_model, 2, dtype=jnp.float32)
                       * (-math.log(10000.0) / d_model))
    pe = jnp.zeros((max_len, d_model), jnp.float32)
    pe = pe.at[:, 0::2].set(jnp.sin(position * div_term))
    if d_model % 2 == 1:
        pe = pe.at[:, 1::2].set(jnp.cos(position * div_term[:-1]))
    else:
        pe = pe.at[:, 1::2].set(jnp.cos(position * div_term))
    return pe[:, None, :]                               # (max_len, 1, d_model)


def init_params(key, in_dim, out_dim, hidden, enc_layers=3, dec_layers=1,
                max_len=1024):
    # input_already_encoded=True => hidden overwritten to in_dim
    hidden = in_dim
    nhead = int(math.ceil(hidden / 64))
    if hidden % nhead != 0:
        nhead = 1
    E = hidden
    F = 4 * E
    P = ((out_dim + 127) // 128) * 128   # lane-dense padded fc_out width

    keys = iter(jax.random.split(key, 512))

    def w(shape, scale=0.05):
        # matmul weights stored in bf16 (f32 accumulation inside the kernels)
        return (scale * jax.random.normal(next(keys), shape, jnp.float32)
                ).astype(jnp.bfloat16)

    def zeros(shape):
        return jnp.zeros(shape, jnp.float32)

    def ones(shape):
        return jnp.ones(shape, jnp.float32)

    def enc_stack_params(L):
        return dict(
            wq=w((L, E, E)), wk=w((L, E, E)), wv=w((L, E, E)),
            bq=zeros((L, 1, E)), bk=zeros((L, 1, E)), bv=zeros((L, 1, E)),
            wo=w((L, E, E)), bo=zeros((L, 1, E)),
            n1g=ones((L, 1, E)), n1b=zeros((L, 1, E)),
            w1=w((L, E, F)), b1=zeros((L, 1, F)),
            w2=w((L, F, E)), b2=zeros((L, 1, E)),
            n2g=ones((L, 1, E)), n2b=zeros((L, 1, E)),
        )

    def dec_stack_params(L):
        return dict(
            sa_wq=w((L, E, E)), sa_wk=w((L, E, E)), sa_wv=w((L, E, E)),
            sa_bq=zeros((L, 1, E)), sa_bk=zeros((L, 1, E)), sa_bv=zeros((L, 1, E)),
            sa_wo=w((L, E, E)), sa_bo=zeros((L, 1, E)),
            n1g=ones((L, 1, E)), n1b=zeros((L, 1, E)),
            ca_wq=w((L, E, E)), ca_wk=w((L, E, E)), ca_wv=w((L, E, E)),
            ca_bq=zeros((L, 1, E)), ca_bk=zeros((L, 1, E)), ca_bv=zeros((L, 1, E)),
            ca_wo=w((L, E, E)), ca_bo=zeros((L, 1, E)),
            n2g=ones((L, 1, E)), n2b=zeros((L, 1, E)),
            w1=w((L, E, F)), b1=zeros((L, 1, F)),
            w2=w((L, F, E)), b2=zeros((L, 1, E)),
            n3g=ones((L, 1, E)), n3b=zeros((L, 1, E)),
        )

    fc_w = 0.05 * jax.random.normal(next(keys), (E, out_dim), jnp.float32)
    fc_w_pad = jnp.zeros((E, P), jnp.float32).at[:, :out_dim].set(fc_w)
    fc_w_pad = fc_w_pad.astype(jnp.bfloat16)
    fc_b_pad = jnp.zeros((1, P), jnp.float32)

    return dict(
        nhead=nhead, out_dim=out_dim, out_pad=P,
        pe_enc=make_pe(max_len, in_dim), pe_enc_scale=jnp.float32(1.0),
        pe_dec=make_pe(max_len, E), pe_dec_scale=jnp.float32(1.0),
        dec_emb=jax.random.normal(next(keys), (out_dim, E), jnp.float32),
        enc=enc_stack_params(enc_layers), dec=dec_stack_params(dec_layers),
        enc_norm_g=ones((1, E)), enc_norm_b=zeros((1, E)),
        dec_norm_g=ones((1, E)), dec_norm_b=zeros((1, E)),
        fc_out_w=fc_w_pad, fc_out_b=fc_b_pad,
    )


# ----------------------------------------------------------------------------
if __name__ == "__main__":
    in_dim, out_dim = 32, 16      # hidden is overwritten to in_dim (32) -> nhead=1
    S, T, B = 8, 8, 2

    key = jax.random.PRNGKey(0)
    kp, ks, kt = jax.random.split(key, 3)

    params = init_params(kp, in_dim, out_dim, hidden=64,
                         enc_layers=3, dec_layers=1, max_len=1024)

    src = jax.random.normal(ks, (S, B, in_dim), jnp.float32)   # already-encoded input
    tgt = jax.random.randint(kt, (T, B), 0, out_dim, dtype=jnp.int32)

    out = transformer_forward(params, src, tgt)
    out = jax.block_until_ready(out)
    assert out.shape == (T, B, out_dim)
    assert bool(jnp.all(jnp.isfinite(out)))
    print("KERNEL_OK")
</pallas_src>

<mosaic_0001>
module attributes {stable_mosaic.version = 11 : i64} {
  func.func @_encoder_layer_kernel(%arg0: i32, %arg1: i32, %arg2: memref<8x32xf32, #tpu.memory_space<vmem>>, %arg3: memref<1x32x32xbf16, #tpu.memory_space<vmem>>, %arg4: memref<1x32x32xbf16, #tpu.memory_space<vmem>>, %arg5: memref<1x32x32xbf16, #tpu.memory_space<vmem>>, %arg6: memref<1x1x32xf32, #tpu.memory_space<vmem>>, %arg7: memref<1x1x32xf32, #tpu.memory_space<vmem>>, %arg8: memref<1x1x32xf32, #tpu.memory_space<vmem>>, %arg9: memref<1x32x32xbf16, #tpu.memory_space<vmem>>, %arg10: memref<1x1x32xf32, #tpu.memory_space<vmem>>, %arg11: memref<1x1x32xf32, #tpu.memory_space<vmem>>, %arg12: memref<1x1x32xf32, #tpu.memory_space<vmem>>, %arg13: memref<1x32x128xbf16, #tpu.memory_space<vmem>>, %arg14: memref<1x1x128xf32, #tpu.memory_space<vmem>>, %arg15: memref<1x128x32xbf16, #tpu.memory_space<vmem>>, %arg16: memref<1x1x32xf32, #tpu.memory_space<vmem>>, %arg17: memref<1x1x32xf32, #tpu.memory_space<vmem>>, %arg18: memref<1x1x32xf32, #tpu.memory_space<vmem>>, %arg19: memref<1x32xf32, #tpu.memory_space<vmem>>, %arg20: memref<1x32xf32, #tpu.memory_space<vmem>>, %arg21: memref<8x32xf32, #tpu.memory_space<vmem>>, %arg22: memref<8x32xf32, #tpu.memory_space<vmem>>) attributes {dimension_semantics = [#tpu.dimension_semantics<parallel>, #tpu.dimension_semantics<arbitrary>], iteration_bounds = array<i64: 2, 3>, scalar_prefetch = 0 : i64, scratch_operands = 1 : i64, tpu.core_type = #tpu.core_type<tc>, window_params = [{transform_indices = @transform_0, window_bounds = array<i64: 8, 32>}, {transform_indices = @transform_1, window_bounds = array<i64: 1, 32, 32>}, {transform_indices = @transform_2, window_bounds = array<i64: 1, 32, 32>}, {transform_indices = @transform_3, window_bounds = array<i64: 1, 32, 32>}, {transform_indices = @transform_4, window_bounds = array<i64: 1, 1, 32>}, {transform_indices = @transform_5, window_bounds = array<i64: 1, 1, 32>}, {transform_indices = @transform_6, window_bounds = array<i64: 1, 1, 32>}, {transform_indices = @transform_7, window_bounds = array<i64: 1, 32, 32>}, {transform_indices = @transform_8, window_bounds = array<i64: 1, 1, 32>}, {transform_indices = @transform_9, window_bounds = array<i64: 1, 1, 32>}, {transform_indices = @transform_10, window_bounds = array<i64: 1, 1, 32>}, {transform_indices = @transform_11, window_bounds = array<i64: 1, 32, 128>}, {transform_indices = @transform_12, window_bounds = array<i64: 1, 1, 128>}, {transform_indices = @transform_13, window_bounds = array<i64: 1, 128, 32>}, {transform_indices = @transform_14, window_bounds = array<i64: 1, 1, 32>}, {transform_indices = @transform_15, window_bounds = array<i64: 1, 1, 32>}, {transform_indices = @transform_16, window_bounds = array<i64: 1, 1, 32>}, {pipeline_mode = #tpu.pipeline_mode<synchronous>, transform_indices = @transform_17, window_bounds = array<i64: 1, 32>}, {pipeline_mode = #tpu.pipeline_mode<synchronous>, transform_indices = @transform_18, window_bounds = array<i64: 1, 32>}, {transform_indices = @transform_19, window_bounds = array<i64: 8, 32>}]} {
    %c0_i32 = arith.constant 0 : i32
    %0 = arith.cmpi eq, %arg1, %c0_i32 : i32
    %1 = arith.extui %0 : i1 to i32
    %c0_i32_0 = arith.constant 0 : i32
    %2 = arith.cmpi ne, %1, %c0_i32_0 : i32
    scf.if %2 {
      %c0_74 = arith.constant 0 : index
      %c0_75 = arith.constant 0 : index
      %128 = vector.load %arg2[%c0_74, %c0_75] : memref<8x32xf32, #tpu.memory_space<vmem>>, vector<8x32xf32>
      %c0_76 = arith.constant 0 : index
      %c0_77 = arith.constant 0 : index
      %129 = vector.load %arg22[%c0_76, %c0_77] : memref<8x32xf32, #tpu.memory_space<vmem>>, vector<8x32xf32>
      tpu.vector_store %arg22[%c0_76, %c0_77], %128 {strides = array<i32>} : memref<8x32xf32, #tpu.memory_space<vmem>>, vector<8x32xf32>,
    } else {
    }
    %c0 = arith.constant 0 : index
    %c0_1 = arith.constant 0 : index
    %3 = vector.load %arg22[%c0, %c0_1] : memref<8x32xf32, #tpu.memory_space<vmem>>, vector<8x32xf32>
    %4 = arith.truncf %3 : vector<8x32xf32> to vector<8x32xbf16>
    %c0_2 = arith.constant 0 : index
    %c0_3 = arith.constant 0 : index
    %c0_4 = arith.constant 0 : index
    %5 = vector.load %arg3[%c0_2, %c0_3, %c0_4] : memref<1x32x32xbf16, #tpu.memory_space<vmem>>, vector<1x32x32xbf16>
    %6 = vector.shape_cast %5 : vector<1x32x32xbf16> to vector<32x32xbf16>
    %cst = arith.constant dense<0.000000e+00> : vector<8x32xf32>
    %7 = tpu.matmul %4, %6, %cst {dimension_numbers = #tpu.dot_dimension_numbers<[1], [0], [0], [1], [0, 0, 1, 1], [], []>} : vector<8x32xbf16>, vector<32x32xbf16>, vector<8x32xf32> -> vector<8x32xf32>
    %c0_5 = arith.constant 0 : index
    %c0_6 = arith.constant 0 : index
    %c0_7 = arith.constant 0 : index
    %8 = vector.load %arg6[%c0_5, %c0_6, %c0_7] : memref<1x1x32xf32, #tpu.memory_space<vmem>>, vector<1x1x32xf32>
    %9 = vector.shape_cast %8 : vector<1x1x32xf32> to vector<1x32xf32>
    %10 = vector.broadcast %9 : vector<1x32xf32> to vector<8x32xf32>
    %11 = arith.addf %7, %10 : vector<8x32xf32>
    %c0_8 = arith.constant 0 : index
    %c0_9 = arith.constant 0 : index
    %c0_10 = arith.constant 0 : index
    %12 = vector.load %arg4[%c0_8, %c0_9, %c0_10] : memref<1x32x32xbf16, #tpu.memory_space<vmem>>, vector<1x32x32xbf16>
    %13 = vector.shape_cast %12 : vector<1x32x32xbf16> to vector<32x32xbf16>
    %cst_11 = arith.constant dense<0.000000e+00> : vector<8x32xf32>
    %14 = tpu.matmul %4, %13, %cst_11 {dimension_numbers = #tpu.dot_dimension_numbers<[1], [0], [0], [1], [0, 0, 1, 1], [], []>} : vector<8x32xbf16>, vector<32x32xbf16>, vector<8x32xf32> -> vector<8x32xf32>
    %c0_12 = arith.constant 0 : index
    %c0_13 = arith.constant 0 : index
    %c0_14 = arith.constant 0 : index
    %15 = vector.load %arg7[%c0_12, %c0_13, %c0_14] : memref<1x1x32xf32, #tpu.memory_space<vmem>>, vector<1x1x32xf32>
    %16 = vector.shape_cast %15 : vector<1x1x32xf32> to vector<1x32xf32>
    %17 = vector.broadcast %16 : vector<1x32xf32> to vector<8x32xf32>
    %18 = arith.addf %14, %17 : vector<8x32xf32>
    %c0_15 = arith.constant 0 : index
    %c0_16 = arith.constant 0 : index
    %c0_17 = arith.constant 0 : index
    %19 = vector.load %arg5[%c0_15, %c0_16, %c0_17] : memref<1x32x32xbf16, #tpu.memory_space<vmem>>, vector<1x32x32xbf16>
    %20 = vector.shape_cast %19 : vector<1x32x32xbf16> to vector<32x32xbf16>
    %cst_18 = arith.constant dense<0.000000e+00> : vector<8x32xf32>
    %21 = tpu.matmul %4, %20, %cst_18 {dimension_numbers = #tpu.dot_dimension_numbers<[1], [0], [0], [1], [0, 0, 1, 1], [], []>} : vector<8x32xbf16>, vector<32x32xbf16>, vector<8x32xf32> -> vector<8x32xf32>
    %c0_19 = arith.constant 0 : index
    %c0_20 = arith.constant 0 : index
    %c0_21 = arith.constant 0 : index
    %22 = vector.load %arg8[%c0_19, %c0_20, %c0_21] : memref<1x1x32xf32, #tpu.memory_space<vmem>>, vector<1x1x32xf32>
    %23 = vector.shape_cast %22 : vector<1x1x32xf32> to vector<1x32xf32>
    %24 = vector.broadcast %23 : vector<1x32xf32> to vector<8x32xf32>
    %25 = arith.addf %21, %24 : vector<8x32xf32>
    %cst_22 = arith.constant 0.176776692 : f32
    %26 = vector.broadcast %cst_22 : f32 to vector<8x32xf32>
    %27 = arith.mulf %11, %26 : vector<8x32xf32>
    %28 = arith.truncf %27 : vector<8x32xf32> to vector<8x32xbf16>
    %29 = arith.truncf %18 : vector<8x32xf32> to vector<8x32xbf16>
    %cst_23 = arith.constant dense<0.000000e+00> : vector<8x8xf32>
    %30 = tpu.matmul %28, %29, %cst_23 {dimension_numbers = #tpu.dot_dimension_numbers<[1], [1], [0], [0], [0, 0, 1, 0], [], []>} : vector<8x32xbf16>, vector<8x32xbf16>, vector<8x8xf32> -> vector<8x8xf32>
    %cst_24 = arith.constant dense<0xFF800000> : vector<8xf32>
    %31 = vector.multi_reduction <maximumf>, %30, %cst_24 [1] : vector<8x8xf32> to vector<8xf32>
    %32 = vector.shape_cast %31 : vector<8xf32> to vector<8x1xf32>
    %33 = vector.broadcast %32 : vector<8x1xf32> to vector<8x8xf32>
    %34 = arith.subf %30, %33 : vector<8x8xf32>
    %35 = math.exp %34 : vector<8x8xf32>
    %cst_25 = arith.constant dense<0.000000e+00> : vector<8xf32>
    %36 = vector.multi_reduction <add>, %35, %cst_25 [1] : vector<8x8xf32> to vector<8xf32>
    %37 = vector.shape_cast %36 : vector<8xf32> to vector<8x1xf32>
    %38 = tpu.reciprocal %37 {approx = true} : vector<8x1xf32> -> vector<8x1xf32>
    %39 = vector.broadcast %38 : vector<8x1xf32> to vector<8x8xf32>
    %40 = arith.mulf %35, %39 : vector<8x8xf32>
    %41 = arith.truncf %40 : vector<8x8xf32> to vector<8x8xbf16>
    %42 = arith.truncf %25 : vector<8x32xf32> to vector<8x32xbf16>
    %cst_26 = arith.constant dense<0.000000e+00> : vector<8x32xf32>
    %43 = tpu.matmul %41, %42, %cst_26 {dimension_numbers = #tpu.dot_dimension_numbers<[1], [0], [0], [1], [0, 0, 1, 1], [], []>} : vector<8x8xbf16>, vector<8x32xbf16>, vector<8x32xf32> -> vector<8x32xf32>
    %44 = arith.truncf %43 : vector<8x32xf32> to vector<8x32xbf16>
    %c0_27 = arith.constant 0 : index
    %c0_28 = arith.constant 0 : index
    %c0_29 = arith.constant 0 : index
    %45 = vector.load %arg9[%c0_27, %c0_28, %c0_29] : memref<1x32x32xbf16, #tpu.memory_space<vmem>>, vector<1x32x32xbf16>
    %46 = vector.shape_cast %45 : vector<1x32x32xbf16> to vector<32x32xbf16>
    %cst_30 = arith.constant dense<0.000000e+00> : vector<8x32xf32>
    %47 = tpu.matmul %44, %46, %cst_30 {dimension_numbers = #tpu.dot_dimension_numbers<[1], [0], [0], [1], [0, 0, 1, 1], [], []>} : vector<8x32xbf16>, vector<32x32xbf16>, vector<8x32xf32> -> vector<8x32xf32>
    %c0_31 = arith.constant 0 : index
    %c0_32 = arith.constant 0 : index
    %c0_33 = arith.constant 0 : index
    %48 = vector.load %arg10[%c0_31, %c0_32, %c0_33] : memref<1x1x32xf32, #tpu.memory_space<vmem>>, vector<1x1x32xf32>
    %49 = vector.shape_cast %48 : vector<1x1x32xf32> to vector<1x32xf32>
    %50 = vector.broadcast %49 : vector<1x32xf32> to vector<8x32xf32>
    %51 = arith.addf %47, %50 : vector<8x32xf32>
    %52 = arith.addf %3, %51 : vector<8x32xf32>
    %c0_34 = arith.constant 0 : index
    %c0_35 = arith.constant 0 : index
    %c0_36 = arith.constant 0 : index
    %53 = vector.load %arg11[%c0_34, %c0_35, %c0_36] : memref<1x1x32xf32, #tpu.memory_space<vmem>>, vector<1x1x32xf32>
    %54 = vector.shape_cast %53 : vector<1x1x32xf32> to vector<1x32xf32>
    %c0_37 = arith.constant 0 : index
    %c0_38 = arith.constant 0 : index
    %c0_39 = arith.constant 0 : index
    %55 = vector.load %arg12[%c0_37, %c0_38, %c0_39] : memref<1x1x32xf32, #tpu.memory_space<vmem>>, vector<1x1x32xf32>
    %56 = vector.shape_cast %55 : vector<1x1x32xf32> to vector<1x32xf32>
    %cst_40 = arith.constant dense<0.000000e+00> : vector<8xf32>
    %57 = vector.multi_reduction <add>, %52, %cst_40 [1] : vector<8x32xf32> to vector<8xf32>
    %58 = vector.shape_cast %57 : vector<8xf32> to vector<8x1xf32>
    %cst_41 = arith.constant 3.200000e+01 : f32
    %59 = vector.broadcast %cst_41 : f32 to vector<8x1xf32>
    %60 = arith.divf %58, %59 : vector<8x1xf32>
    %61 = vector.broadcast %60 : vector<8x1xf32> to vector<8x32xf32>
    %62 = arith.subf %52, %61 : vector<8x32xf32>
    %63 = arith.mulf %62, %62 : vector<8x32xf32>
    %cst_42 = arith.constant dense<0.000000e+00> : vector<8xf32>
    %64 = vector.multi_reduction <add>, %63, %cst_42 [1] : vector<8x32xf32> to vector<8xf32>
    %65 = vector.shape_cast %64 : vector<8xf32> to vector<8x1xf32>
    %cst_43 = arith.constant 3.200000e+01 : f32
    %66 = vector.broadcast %cst_43 : f32 to vector<8x1xf32>
    %67 = arith.divf %65, %66 : vector<8x1xf32>
    %68 = vector.broadcast %60 : vector<8x1xf32> to vector<8x32xf32>
    %69 = arith.subf %52, %68 : vector<8x32xf32>
    %cst_44 = arith.constant 9.99999974E-6 : f32
    %70 = vector.broadcast %cst_44 : f32 to vector<8x1xf32>
    %71 = arith.addf %67, %70 : vector<8x1xf32>
    %72 = math.rsqrt %71 : vector<8x1xf32>
    %73 = vector.broadcast %72 : vector<8x1xf32> to vector<8x32xf32>
    %74 = arith.mulf %69, %73 : vector<8x32xf32>
    %75 = vector.broadcast %54 : vector<1x32xf32> to vector<8x32xf32>
    %76 = arith.mulf %74, %75 : vector<8x32xf32>
    %77 = vector.broadcast %56 : vector<1x32xf32> to vector<8x32xf32>
    %78 = arith.addf %76, %77 : vector<8x32xf32>
    %79 = arith.truncf %78 : vector<8x32xf32> to vector<8x32xbf16>
    %c0_45 = arith.constant 0 : index
    %c0_46 = arith.constant 0 : index
    %c0_47 = arith.constant 0 : index
    %80 = vector.load %arg13[%c0_45, %c0_46, %c0_47] : memref<1x32x128xbf16, #tpu.memory_space<vmem>>, vector<1x32x128xbf16>
    %81 = vector.shape_cast %80 : vector<1x32x128xbf16> to vector<32x128xbf16>
    %cst_48 = arith.constant dense<0.000000e+00> : vector<8x128xf32>
    %82 = tpu.matmul %79, %81, %cst_48 {dimension_numbers = #tpu.dot_dimension_numbers<[1], [0], [0], [1], [0, 0, 1, 1], [], []>} : vector<8x32xbf16>, vector<32x128xbf16>, vector<8x128xf32> -> vector<8x128xf32>
    %c0_49 = arith.constant 0 : index
    %c0_50 = arith.constant 0 : index
    %c0_51 = arith.constant 0 : index
    %83 = vector.load %arg14[%c0_49, %c0_50, %c0_51] : memref<1x1x128xf32, #tpu.memory_space<vmem>>, vector<1x1x128xf32>
    %84 = vector.shape_cast %83 : vector<1x1x128xf32> to vector<1x128xf32>
    %85 = vector.broadcast %84 : vector<1x128xf32> to vector<8x128xf32>
    %86 = arith.addf %82, %85 : vector<8x128xf32>
    %cst_52 = arith.constant 0.000000e+00 : f32
    %87 = vector.broadcast %cst_52 : f32 to vector<8x128xf32>
    %88 = arith.maximumf %86, %87 : vector<8x128xf32>
    %89 = arith.truncf %88 : vector<8x128xf32> to vector<8x128xbf16>
    %c0_53 = arith.constant 0 : index
    %c0_54 = arith.constant 0 : index
    %c0_55 = arith.constant 0 : index
    %90 = vector.load %arg15[%c0_53, %c0_54, %c0_55] : memref<1x128x32xbf16, #tpu.memory_space<vmem>>, vector<1x128x32xbf16>
    %91 = vector.shape_cast %90 : vector<1x128x32xbf16> to vector<128x32xbf16>
    %cst_56 = arith.constant dense<0.000000e+00> : vector<8x32xf32>
    %92 = tpu.matmul %89, %91, %cst_56 {dimension_numbers = #tpu.dot_dimension_numbers<[1], [0], [0], [1], [0, 0, 1, 1], [], []>} : vector<8x128xbf16>, vector<128x32xbf16>, vector<8x32xf32> -> vector<8x32xf32>
    %c0_57 = arith.constant 0 : index
    %c0_58 = arith.constant 0 : index
    %c0_59 = arith.constant 0 : index
    %93 = vector.load %arg16[%c0_57, %c0_58, %c0_59] : memref<1x1x32xf32, #tpu.memory_space<vmem>>, vector<1x1x32xf32>
    %94 = vector.shape_cast %93 : vector<1x1x32xf32> to vector<1x32xf32>
    %95 = vector.broadcast %94 : vector<1x32xf32> to vector<8x32xf32>
    %96 = arith.addf %92, %95 : vector<8x32xf32>
    %97 = arith.addf %78, %96 : vector<8x32xf32>
    %c0_60 = arith.constant 0 : index
    %c0_61 = arith.constant 0 : index
    %c0_62 = arith.constant 0 : index
    %98 = vector.load %arg17[%c0_60, %c0_61, %c0_62] : memref<1x1x32xf32, #tpu.memory_space<vmem>>, vector<1x1x32xf32>
    %99 = vector.shape_cast %98 : vector<1x1x32xf32> to vector<1x32xf32>
    %c0_63 = arith.constant 0 : index
    %c0_64 = arith.constant 0 : index
    %c0_65 = arith.constant 0 : index
    %100 = vector.load %arg18[%c0_63, %c0_64, %c0_65] : memref<1x1x32xf32, #tpu.memory_space<vmem>>, vector<1x1x32xf32>
    %101 = vector.shape_cast %100 : vector<1x1x32xf32> to vector<1x32xf32>
    %cst_66 = arith.constant dense<0.000000e+00> : vector<8xf32>
    %102 = vector.multi_reduction <add>, %97, %cst_66 [1] : vector<8x32xf32> to vector<8xf32>
    %103 = vector.shape_cast %102 : vector<8xf32> to vector<8x1xf32>
    %cst_67 = arith.constant 3.200000e+01 : f32
    %104 = vector.broadcast %cst_67 : f32 to vector<8x1xf32>
    %105 = arith.divf %103, %104 : vector<8x1xf32>
    %106 = vector.broadcast %105 : vector<8x1xf32> to vector<8x32xf32>
    %107 = arith.subf %97, %106 : vector<8x32xf32>
    %108 = arith.mulf %107, %107 : vector<8x32xf32>
    %cst_68 = arith.constant dense<0.000000e+00> : vector<8xf32>
    %109 = vector.multi_reduction <add>, %108, %cst_68 [1] : vector<8x32xf32> to vector<8xf32>
    %110 = vector.shape_cast %109 : vector<8xf32> to vector<8x1xf32>
    %cst_69 = arith.constant 3.200000e+01 : f32
    %111 = vector.broadcast %cst_69 : f32 to vector<8x1xf32>
    %112 = arith.divf %110, %111 : vector<8x1xf32>
    %113 = vector.broadcast %105 : vector<8x1xf32> to vector<8x32xf32>
    %114 = arith.subf %97, %113 : vector<8x32xf32>
    %cst_70 = arith.constant 9.99999974E-6 : f32
    %115 = vector.broadcast %cst_70 : f32 to vector<8x1xf32>
    %116 = arith.addf %112, %115 : vector<8x1xf32>
    %117 = math.rsqrt %116 : vector<8x1xf32>
    %118 = vector.broadcast %117 : vector<8x1xf32> to vector<8x32xf32>
    %119 = arith.mulf %114, %118 : vector<8x32xf32>
    %120 = vector.broadcast %99 : vector<1x32xf32> to vector<8x32xf32>
    %121 = arith.mulf %119, %120 : vector<8x32xf32>
    %122 = vector.broadcast %101 : vector<1x32xf32> to vector<8x32xf32>
    %123 = arith.addf %121, %122 : vector<8x32xf32>
    %c0_71 = arith.constant 0 : index
    %c0_72 = arith.constant 0 : index
    %124 = vector.load %arg22[%c0_71, %c0_72] : memref<8x32xf32, #tpu.memory_space<vmem>>, vector<8x32xf32>
    tpu.vector_store %arg22[%c0_71, %c0_72], %123 {strides = array<i32>} : memref<8x32xf32, #tpu.memory_space<vmem>>, vector<8x32xf32>,
    %c2_i32 = arith.constant 2 : i32
    %125 = arith.cmpi eq, %arg1, %c2_i32 : i32
    %126 = arith.extui %125 : i1 to i32
    %c0_i32_73 = arith.constant 0 : i32
    %127 = arith.cmpi ne, %126, %c0_i32_73 : i32
    scf.if %127 {
      %c0_74 = arith.constant 0 : index
      %c0_75 = arith.constant 0 : index
      %128 = vector.load %arg19[%c0_74, %c0_75] : memref<1x32xf32, #tpu.memory_space<vmem>>, vector<1x32xf32>
      %c0_76 = arith.constant 0 : index
      %c0_77 = arith.constant 0 : index
      %129 = vector.load %arg20[%c0_76, %c0_77] : memref<1x32xf32, #tpu.memory_space<vmem>>, vector<1x32xf32>
      %cst_78 = arith.constant dense<0.000000e+00> : vector<8xf32>
      %130 = vector.multi_reduction <add>, %123, %cst_78 [1] : vector<8x32xf32> to vector<8xf32>
      %131 = vector.shape_cast %130 : vector<8xf32> to vector<8x1xf32>
      %cst_79 = arith.constant 3.200000e+01 : f32
      %132 = vector.broadcast %cst_79 : f32 to vector<8x1xf32>
      %133 = arith.divf %131, %132 : vector<8x1xf32>
      %134 = vector.broadcast %133 : vector<8x1xf32> to vector<8x32xf32>
      %135 = arith.subf %123, %134 : vector<8x32xf32>
      %136 = arith.mulf %135, %135 : vector<8x32xf32>
      %cst_80 = arith.constant dense<0.000000e+00> : vector<8xf32>
      %137 = vector.multi_reduction <add>, %136, %cst_80 [1] : vector<8x32xf32> to vector<8xf32>
      %138 = vector.shape_cast %137 : vector<8xf32> to vector<8x1xf32>
      %cst_81 = arith.constant 3.200000e+01 : f32
      %139 = vector.broadcast %cst_81 : f32 to vector<8x1xf32>
      %140 = arith.divf %138, %139 : vector<8x1xf32>
      %141 = vector.broadcast %133 : vector<8x1xf32> to vector<8x32xf32>
      %142 = arith.subf %123, %141 : vector<8x32xf32>
      %cst_82 = arith.constant 9.99999974E-6 : f32
      %143 = vector.broadcast %cst_82 : f32 to vector<8x1xf32>
      %144 = arith.addf %140, %143 : vector<8x1xf32>
      %145 = math.rsqrt %144 : vector<8x1xf32>
      %146 = vector.broadcast %145 : vector<8x1xf32> to vector<8x32xf32>
      %147 = arith.mulf %142, %146 : vector<8x32xf32>
      %148 = vector.broadcast %128 : vector<1x32xf32> to vector<8x32xf32>
      %149 = arith.mulf %147, %148 : vector<8x32xf32>
      %150 = vector.broadcast %129 : vector<1x32xf32> to vector<8x32xf32>
      %151 = arith.addf %149, %150 : vector<8x32xf32>
      %c0_83 = arith.constant 0 : index
      %c0_84 = arith.constant 0 : index
      %152 = vector.load %arg21[%c0_83, %c0_84] : memref<8x32xf32, #tpu.memory_space<vmem>>, vector<8x32xf32>
      tpu.vector_store %arg21[%c0_83, %c0_84], %151 {strides = array<i32>} : memref<8x32xf32, #tpu.memory_space<vmem>>, vector<8x32xf32>,
    } else {
    }
    return
  }
  func.func @transform_0(%arg0: i32, %arg1: i32) -> (i32, i32) {
    %c0_i32 = arith.constant 0 : i32
    %c0_i32_0 = arith.constant 0 : i32
    return %arg0, %c0_i32 : i32, i32
  }
  func.func @transform_1(%arg0: i32, %arg1: i32) -> (i32, i32, i32) {
    %c0_i32 = arith.constant 0 : i32
    %c0_i32_0 = arith.constant 0 : i32
    %c0_i32_1 = arith.constant 0 : i32
    return %arg1, %c0_i32, %c0_i32_0 : i32, i32, i32
  }
  func.func @transform_2(%arg0: i32, %arg1: i32) -> (i32, i32, i32) {
    %c0_i32 = arith.constant 0 : i32
    %c0_i32_0 = arith.constant 0 : i32
    %c0_i32_1 = arith.constant 0 : i32
    return %arg1, %c0_i32, %c0_i32_0 : i32, i32, i32
  }
  func.func @transform_3(%arg0: i32, %arg1: i32) -> (i32, i32, i32) {
    %c0_i32 = arith.constant 0 : i32
    %c0_i32_0 = arith.constant 0 : i32
    %c0_i32_1 = arith.constant 0 : i32
    return %arg1, %c0_i32, %c0_i32_0 : i32, i32, i32
  }
  func.func @transform_4(%arg0: i32, %arg1: i32) -> (i32, i32, i32) {
    %c0_i32 = arith.constant 0 : i32
    %c0_i32_0 = arith.constant 0 : i32
    %c0_i32_1 = arith.constant 0 : i32
    return %arg1, %c0_i32, %c0_i32_0 : i32, i32, i32
  }
  func.func @transform_5(%arg0: i32, %arg1: i32) -> (i32, i32, i32) {
    %c0_i32 = arith.constant 0 : i32
    %c0_i32_0 = arith.constant 0 : i32
    %c0_i32_1 = arith.constant 0 : i32
    return %arg1, %c0_i32, %c0_i32_0 : i32, i32, i32
  }
  func.func @transform_6(%arg0: i32, %arg1: i32) -> (i32, i32, i32) {
    %c0_i32 = arith.constant 0 : i32
    %c0_i32_0 = arith.constant 0 : i32
    %c0_i32_1 = arith.constant 0 : i32
    return %arg1, %c0_i32, %c0_i32_0 : i32, i32, i32
  }
  func.func @transform_7(%arg0: i32, %arg1: i32) -> (i32, i32, i32) {
    %c0_i32 = arith.constant 0 : i32
    %c0_i32_0 = arith.constant 0 : i32
    %c0_i32_1 = arith.constant 0 : i32
    return %arg1, %c0_i32, %c0_i32_0 : i32, i32, i32
  }
  func.func @transform_8(%arg0: i32, %arg1: i32) -> (i32, i32, i32) {
    %c0_i32 = arith.constant 0 : i32
    %c0_i32_0 = arith.constant 0 : i32
    %c0_i32_1 = arith.constant 0 : i32
    return %arg1, %c0_i32, %c0_i32_0 : i32, i32, i32
  }
  func.func @transform_9(%arg0: i32, %arg1: i32) -> (i32, i32, i32) {
    %c0_i32 = arith.constant 0 : i32
    %c0_i32_0 = arith.constant 0 : i32
    %c0_i32_1 = arith.constant 0 : i32
    return %arg1, %c0_i32, %c0_i32_0 : i32, i32, i32
  }
  func.func @transform_10(%arg0: i32, %arg1: i32) -> (i32, i32, i32) {
    %c0_i32 = arith.constant 0 : i32
    %c0_i32_0 = arith.constant 0 : i32
    %c0_i32_1 = arith.constant 0 : i32
    return %arg1, %c0_i32, %c0_i32_0 : i32, i32, i32
  }
  func.func @transform_11(%arg0: i32, %arg1: i32) -> (i32, i32, i32) {
    %c0_i32 = arith.constant 0 : i32
    %c0_i32_0 = arith.constant 0 : i32
    %c0_i32_1 = arith.constant 0 : i32
    return %arg1, %c0_i32, %c0_i32_0 : i32, i32, i32
  }
  func.func @transform_12(%arg0: i32, %arg1: i32) -> (i32, i32, i32) {
    %c0_i32 = arith.constant 0 : i32
    %c0_i32_0 = arith.constant 0 : i32
    %c0_i32_1 = arith.constant 0 : i32
    return %arg1, %c0_i32, %c0_i32_0 : i32, i32, i32
  }
  func.func @transform_13(%arg0: i32, %arg1: i32) -> (i32, i32, i32) {
    %c0_i32 = arith.constant 0 : i32
    %c0_i32_0 = arith.constant 0 : i32
    %c0_i32_1 = arith.constant 0 : i32
    return %arg1, %c0_i32, %c0_i32_0 : i32, i32, i32
  }
  func.func @transform_14(%arg0: i32, %arg1: i32) -> (i32, i32, i32) {
    %c0_i32 = arith.constant 0 : i32
    %c0_i32_0 = arith.constant 0 : i32
    %c0_i32_1 = arith.constant 0 : i32
    return %arg1, %c0_i32, %c0_i32_0 : i32, i32, i32
  }
  func.func @transform_15(%arg0: i32, %arg1: i32) -> (i32, i32, i32) {
    %c0_i32 = arith.constant 0 : i32
    %c0_i32_0 = arith.constant 0 : i32
    %c0_i32_1 = arith.constant 0 : i32
    return %arg1, %c0_i32, %c0_i32_0 : i32, i32, i32
  }
  func.func @transform_16(%arg0: i32, %arg1: i32) -> (i32, i32, i32) {
    %c0_i32 = arith.constant 0 : i32
    %c0_i32_0 = arith.constant 0 : i32
    %c0_i32_1 = arith.constant 0 : i32
    return %arg1, %c0_i32, %c0_i32_0 : i32, i32, i32
  }
  func.func @transform_17(%arg0: i32, %arg1: i32) -> (i32, i32) {
    %c0_i32 = arith.constant 0 : i32
    %c0_i32_0 = arith.constant 0 : i32
    %c0_i32_1 = arith.constant 0 : i32
    return %c0_i32, %c0_i32_0 : i32, i32
  }
  func.func @transform_18(%arg0: i32, %arg1: i32) -> (i32, i32) {
    %c0_i32 = arith.constant 0 : i32
    %c0_i32_0 = arith.constant 0 : i32
    %c0_i32_1 = arith.constant 0 : i32
    return %c0_i32, %c0_i32_0 : i32, i32
  }
  func.func @transform_19(%arg0: i32, %arg1: i32) -> (i32, i32) {
    %c0_i32 = arith.constant 0 : i32
    %c0_i32_0 = arith.constant 0 : i32
    return %arg0, %c0_i32 : i32, i32
  }
}

</mosaic_0001>

<llo_original>
// kernel: tpu_custom_call.1
$region0: #{tpu_custom_call.1}
  #allocation0 [shape = 'u32[]', space=smem, size = 0x4, offset = 0x4, fixed_abs, tag = 'smem constant byte address 0x4 - core index']
  #allocation1 [shape = 'u32[144,128]{1,0:T(1,128)}', space=vmem, size = 0x12000, scoped, tag = 'internal scratch']
  #allocation2 [shape = 'f32[8,32]{1,0:T(8,128)}', space=vmem, size = 0x1000, scoped, tag = 'scratch operand']
  %s0 = inlined_call_operand.hbm [shape: f32[16,32], index: 0, kind: input, shape index: {}]
  %s1 = inlined_call_operand.vmem [shape: bf16[3,32,32], index: 1, kind: input, shape index: {}]
  %s2 = inlined_call_operand.vmem [shape: bf16[3,32,32], index: 2, kind: input, shape index: {}]
  %s3 = inlined_call_operand.vmem [shape: bf16[3,32,32], index: 3, kind: input, shape index: {}]
  %s4 = inlined_call_operand.hbm [shape: f32[3,1,32], index: 4, kind: input, shape index: {}]
  %s5 = inlined_call_operand.hbm [shape: f32[3,1,32], index: 5, kind: input, shape index: {}]
  %s6 = inlined_call_operand.hbm [shape: f32[3,1,32], index: 6, kind: input, shape index: {}]
  %s7 = inlined_call_operand.vmem [shape: bf16[3,32,32], index: 7, kind: input, shape index: {}]
  %s8 = inlined_call_operand.hbm [shape: f32[3,1,32], index: 8, kind: input, shape index: {}]
  %s9 = inlined_call_operand.hbm [shape: f32[3,1,32], index: 9, kind: input, shape index: {}]
  %s10 = inlined_call_operand.hbm [shape: f32[3,1,32], index: 10, kind: input, shape index: {}]
  %s11 = inlined_call_operand.vmem [shape: bf16[3,32,128], index: 11, kind: input, shape index: {}]
  %s12 = inlined_call_operand.hbm [shape: f32[3,1,128], index: 12, kind: input, shape index: {}]
  %s13 = inlined_call_operand.vmem [shape: bf16[3,128,32], index: 13, kind: input, shape index: {}]
  %s14 = inlined_call_operand.vmem [shape: f32[3,1,32], index: 14, kind: input, shape index: {}]
  %s15 = inlined_call_operand.vmem [shape: f32[3,1,32], index: 15, kind: input, shape index: {}]
  %s16 = inlined_call_operand.vmem [shape: f32[3,1,32], index: 16, kind: input, shape index: {}]
  %s17 = inlined_call_operand.vmem [shape: f32[1,32], index: 17, kind: input, shape index: {}]
  %s18 = inlined_call_operand.vmem [shape: f32[1,32], index: 18, kind: input, shape index: {}]
  %s19 = inlined_call_operand.hbm [shape: f32[16,32], index: 19, kind: output, shape index: {}]
  %s20 = sld [smem:[#allocation0]]
  $region149: #{tpu_custom_call.1} parent=0
    _
  %s22 = ssub.s32 1, %s20
  %s23 = scalar_select 0, %s22, %s20
  $region1: #{tpu_custom_call.1} parent=0
    #allocation3 [shape = 'u8[8192]{0}', space=vmem, size = 0x2000, scoped, tag = 'input window, operand 0']
    #allocation4 [shape = 's32[2]{0}', space=sflag, size = 0x8, scoped, tag = 'scoped memory for tpu_custom_call.1']
    #allocation5 [shape = 's32[2]{0}', space=sflag, size = 0x8, scoped, tag = 'scoped memory for tpu_custom_call.1']
    #allocation6 [shape = 'u8[1024]{0}', space=vmem, size = 0x400, scoped, tag = 'input window, operand 4']
    #allocation7 [shape = 's32[2]{0}', space=sflag, size = 0x8, scoped, tag = 'scoped memory for tpu_custom_call.1']
    #allocation8 [shape = 'u8[1024]{0}', space=vmem, size = 0x400, scoped, tag = 'input window, operand 5']
    #allocation9 [shape = 'u8[1024]{0}', space=vmem, size = 0x400, scoped, tag = 'input window, operand 6']
    #allocation10 [shape = 's32[2]{0}', space=sflag, size = 0x8, scoped, tag = 'scoped memory for tpu_custom_call.1']
    #allocation11 [shape = 'u8[1024]{0}', space=vmem, size = 0x400, scoped, tag = 'input window, operand 8']
    #allocation12 [shape = 'u8[1024]{0}', space=vmem, size = 0x400, scoped, tag = 'input window, operand 9']
    #allocation13 [shape = 's32[2]{0}', space=sflag, size = 0x8, scoped, tag = 'scoped memory for tpu_custom_call.1']
    #allocation14 [shape = 'u8[1024]{0}', space=vmem, size = 0x400, scoped, tag = 'input window, operand 10']
    #allocation15 [shape = 'u8[1024]{0}', space=vmem, size = 0x400, scoped, tag = 'input window, operand 12']
    #allocation16 [shape = 's32[2]{0}', space=sflag, size = 0x8, scoped, tag = 'scoped memory for tpu_custom_call.1']
    #allocation17 [shape = 'u8[8192]{0}', space=vmem, size = 0x2000, scoped, tag = 'output window, operand 0']
    %24 = vsyncpa [#allocation4], 0
    %s25 = scalar_lea.sflag [#allocation4], 1
    %26 = vsyncpa %s25, 0
    %27 = vsyncpa [#allocation7], 0
    %s28 = scalar_lea.sflag [#allocation7], 1
    %29 = vsyncpa %s28, 0
    %30 = vsyncpa [#allocation10], 0
    %s31 = scalar_lea.sflag [#allocation10], 1
    %32 = vsyncpa %s31, 0
    %33 = vsyncpa [#allocation13], 0
    %s34 = scalar_lea.sflag [#allocation13], 1
    %35 = vsyncpa %s34, 0
    %36 = vsyncpa [#allocation16], 0
    %s37 = scalar_lea.sflag [#allocation16], 1
    %38 = vsyncpa %s37, 0
    %39 = vsyncpa [#allocation5], 0
    %s40 = scalar_lea.sflag [#allocation5], 1
    %41 = vsyncpa %s40, 0
    loop: start=0, step=1, limit=8
    $region2: #{tpu_custom_call.1} parent=1 // loop_pre_header
      _
    $region3: #{tpu_custom_call.1} parent=1 // loop_header
      %s43 = sphi 0, %s47
      %p44 = scmp.ge.s32.totalorder %s43, 8
      %s50 = sphi 0, %s62
      %s51 = sphi 0, %s58
      %s52 = sphi 0, %s50
      %s53 = sphi 0, %s51
      %s54 = sphi 0, %s52
      %s55 = sphi 0, %s53
      %s65 = sphi 0, %s67
      %s68 = sphi 0, %s65
      %s69 = sphi 0, %s68
      %s85 = sphi 0, %s69
      %s91 = sphi 0, %s93
      %s94 = sphi 0, %s91
      %s95 = sphi 0, %s94
      %s111 = sphi 0, %s95
      %s117 = sphi 0, %s119
      %s120 = sphi 0, %s117
      %s121 = sphi 0, %s120
      %s137 = sphi 0, %s121
      %s143 = sphi 0, %s145
      %s146 = sphi 0, %s143
      %s147 = sphi 0, %s146
      %s163 = sphi 0, %s147
      %s169 = sphi 0, %s171
      %s172 = sphi 0, %s169
      %s173 = sphi 0, %s172
      %s189 = sphi 0, %s173
      %s195 = sphi 0, %s197
      %s198 = sphi 0, %s195
      %s199 = sphi 0, %s198
      %s215 = sphi 0, %s199
      %s221 = sphi 0, %s223
      %s224 = sphi 0, %s221
      %s225 = sphi 0, %s224
      %s241 = sphi 0, %s225
      %s247 = sphi 0, %s249
      %s250 = sphi 0, %s247
      %s251 = sphi 0, %s250
      %s267 = sphi 0, %s251
      %s273 = sphi 0, %s275
      %s276 = sphi 0, %s273
      %s277 = sphi 0, %s276
      %s293 = sphi 0, %s277
      %s299 = sphi 0, %s301
      %s302 = sphi 0, %s299
      %s303 = sphi 0, %s302
      %s319 = sphi 0, %s303
      %s325 = sphi 0, %s327
      %s328 = sphi 0, %s325
      %s329 = sphi 0, %s328
      %s345 = sphi 0, %s329
      %s351 = sphi 0, %s353
      %s354 = sphi 0, %s351
      %s355 = sphi 0, %s354
      %s371 = sphi 0, %s355
      %s377 = sphi 0, %s379
      %s380 = sphi 0, %s377
      %s381 = sphi 0, %s380
      %s397 = sphi 0, %s381
      %s403 = sphi 0, %s405
      %s406 = sphi 0, %s403
      %s407 = sphi 0, %s406
      %s423 = sphi 0, %s407
      %s429 = sphi 0, %s431
      %s432 = sphi 0, %s429
      %s433 = sphi 0, %s432
      %s449 = sphi 0, %s433
      %s455 = sphi 0, %s457
      %s458 = sphi 0, %s455
      %s459 = sphi 0, %s458
      %s475 = sphi 0, %s459
      %s481 = sphi 0, %s483
      %s484 = sphi 0, %s481
      %s485 = sphi 0, %s484
      %s501 = sphi 0, %s485
      %s505 = sphi 0, %s505
      %s507 = sphi 0, %s505
      %s508 = sphi 0, %s507
      %s522 = sphi 0, %s508
      %s526 = sphi 0, %s526
      %s528 = sphi 0, %s526
      %s529 = sphi 0, %s528
      %s543 = sphi 0, %s529
      %s549 = sphi 0, %s551
      %s552 = sphi 0, %s549
      %s553 = sphi 0, %s552
      %s569 = sphi 0, %s553
    $region4: #{tpu_custom_call.1} parent=1 // loop_header_branch
      %46 = sbr.rel (%p44) target = $region8
    $region5: #{tpu_custom_call.1} parent=1 // loop_body
      %s48 = ssub.s32 %s43, 1
      %s49 = ssub.s32 %s43, 2
      %s56 = sadd.s32 1, %s51
      %p57 = scmp.ge.s32.totalorder %s56, 3
      %s58 = scalar_select %p57, 0, %s56
      %s59 = sadd.s32 1, %s50
      %s60 = scalar_select %p57, %s59, %s50
      %p61 = scmp.ge.s32.totalorder %s60, 2
      %s62 = scalar_select %p61, 0, %s60
      %s63 = ssub.s32 %s50, %s62
      %p64 = scmp.eq.s32.totalorder %s63, 0
      %s66 = sadd.s32 %s65, 1
      %s67 = scalar_select %p64, %s65, %s66
      %p70 = pneg %p64
      %p71 = scmp.eq.s32.totalorder %s43, 5
      %p72 = por %p70, %p71
      %p73 = scmp.ne.s32.totalorder %s65, %s68
      %p74 = scmp.eq.s32.totalorder %s43, 0
      %p75 = por %p73, %p74
      %p76 = scmp.ne.s32.totalorder %s65, %s68
      %p77 = scmp.eq.s32.totalorder %s48, 5
      %p78 = por %p76, %p77
      %p79 = scmp.ne.s32.totalorder %s68, %s69
      %p80 = scmp.eq.s32.totalorder %s48, 0
      %p81 = por %p79, %p80
      %p82 = scmp.ne.s32.totalorder %s68, %s69
      %p83 = scmp.eq.s32.totalorder %s49, 5
      %p84 = por %p82, %p83
      %p86 = scmp.ne.s32.totalorder %s69, %s85
      %p87 = scmp.eq.s32.totalorder %s49, 0
      %p88 = por %p86, %p87
      %s89 = ssub.s32 %s51, %s58
      %p90 = scmp.eq.s32.totalorder %s89, 0
      %s92 = sadd.s32 %s91, 1
      %s93 = scalar_select %p90, %s91, %s92
      %p96 = pneg %p90
      %p97 = scmp.eq.s32.totalorder %s43, 5
      %p98 = por %p96, %p97
      %p99 = scmp.ne.s32.totalorder %s91, %s94
      %p100 = scmp.eq.s32.totalorder %s43, 0
      %p101 = por %p99, %p100
      %p102 = scmp.ne.s32.totalorder %s91, %s94
      %p103 = scmp.eq.s32.totalorder %s48, 5
      %p104 = por %p102, %p103
      %p105 = scmp.ne.s32.totalorder %s94, %s95
      %p106 = scmp.eq.s32.totalorder %s48, 0
      %p107 = por %p105, %p106
      %p108 = scmp.ne.s32.totalorder %s94, %s95
      %p109 = scmp.eq.s32.totalorder %s49, 5
      %p110 = por %p108, %p109
      %p112 = scmp.ne.s32.totalorder %s95, %s111
      %p113 = scmp.eq.s32.totalorder %s49, 0
      %p114 = por %p112, %p113
      %s115 = ssub.s32 %s51, %s58
      %p116 = scmp.eq.s32.totalorder %s115, 0
      %s118 = sadd.s32 %s117, 1
      %s119 = scalar_select %p116, %s117, %s118
      %p122 = pneg %p116
      %p123 = scmp.eq.s32.totalorder %s43, 5
      %p124 = por %p122, %p123
      %p125 = scmp.ne.s32.totalorder %s117, %s120
      %p126 = scmp.eq.s32.totalorder %s43, 0
      %p127 = por %p125, %p126
      %p128 = scmp.ne.s32.totalorder %s117, %s120
      %p129 = scmp.eq.s32.totalorder %s48, 5
      %p130 = por %p128, %p129
      %p131 = scmp.ne.s32.totalorder %s120, %s121
      %p132 = scmp.eq.s32.totalorder %s48, 0
      %p133 = por %p131, %p132
      %p134 = scmp.ne.s32.totalorder %s120, %s121
      %p135 = scmp.eq.s32.totalorder %s49, 5
      %p136 = por %p134, %p135
      %p138 = scmp.ne.s32.totalorder %s121, %s137
      %p139 = scmp.eq.s32.totalorder %s49, 0
      %p140 = por %p138, %p139
      %s141 = ssub.s32 %s51, %s58
      %p142 = scmp.eq.s32.totalorder %s141, 0
      %s144 = sadd.s32 %s143, 1
      %s145 = scalar_select %p142, %s143, %s144
      %p148 = pneg %p142
      %p149 = scmp.eq.s32.totalorder %s43, 5
      %p150 = por %p148, %p149
      %p151 = scmp.ne.s32.totalorder %s143, %s146
      %p152 = scmp.eq.s32.totalorder %s43, 0
      %p153 = por %p151, %p152
      %p154 = scmp.ne.s32.totalorder %s143, %s146
      %p155 = scmp.eq.s32.totalorder %s48, 5
      %p156 = por %p154, %p155
      %p157 = scmp.ne.s32.totalorder %s146, %s147
      %p158 = scmp.eq.s32.totalorder %s48, 0
      %p159 = por %p157, %p158
      %p160 = scmp.ne.s32.totalorder %s146, %s147
      %p161 = scmp.eq.s32.totalorder %s49, 5
      %p162 = por %p160, %p161
      %p164 = scmp.ne.s32.totalorder %s147, %s163
      %p165 = scmp.eq.s32.totalorder %s49, 0
      %p166 = por %p164, %p165
      %s167 = ssub.s32 %s51, %s58
      %p168 = scmp.eq.s32.totalorder %s167, 0
      %s170 = sadd.s32 %s169, 1
      %s171 = scalar_select %p168, %s169, %s170
      %p174 = pneg %p168
      %p175 = scmp.eq.s32.totalorder %s43, 5
      %p176 = por %p174, %p175
      %p177 = scmp.ne.s32.totalorder %s169, %s172
      %p178 = scmp.eq.s32.totalorder %s43, 0
      %p179 = por %p177, %p178
      %p180 = scmp.ne.s32.totalorder %s169, %s172
      %p181 = scmp.eq.s32.totalorder %s48, 5
      %p182 = por %p180, %p181
      %p183 = scmp.ne.s32.totalorder %s172, %s173
      %p184 = scmp.eq.s32.totalorder %s48, 0
      %p185 = por %p183, %p184
      %p186 = scmp.ne.s32.totalorder %s172, %s173
      %p187 = scmp.eq.s32.totalorder %s49, 5
      %p188 = por %p186, %p187
      %p190 = scmp.ne.s32.totalorder %s173, %s189
      %p191 = scmp.eq.s32.totalorder %s49, 0
      %p192 = por %p190, %p191
      %s193 = ssub.s32 %s51, %s58
      %p194 = scmp.eq.s32.totalorder %s193, 0
      %s196 = sadd.s32 %s195, 1
      %s197 = scalar_select %p194, %s195, %s196
      %p200 = pneg %p194
      %p201 = scmp.eq.s32.totalorder %s43, 5
      %p202 = por %p200, %p201
      %p203 = scmp.ne.s32.totalorder %s195, %s198
      %p204 = scmp.eq.s32.totalorder %s43, 0
      %p205 = por %p203, %p204
      %p206 = scmp.ne.s32.totalorder %s195, %s198
      %p207 = scmp.eq.s32.totalorder %s48, 5
      %p208 = por %p206, %p207
      %p209 = scmp.ne.s32.totalorder %s198, %s199
      %p210 = scmp.eq.s32.totalorder %s48, 0
      %p211 = por %p209, %p210
      %p212 = scmp.ne.s32.totalorder %s198, %s199
      %p213 = scmp.eq.s32.totalorder %s49, 5
      %p214 = por %p212, %p213
      %p216 = scmp.ne.s32.totalorder %s199, %s215
      %p217 = scmp.eq.s32.totalorder %s49, 0
      %p218 = por %p216, %p217
      %s219 = ssub.s32 %s51, %s58
      %p220 = scmp.eq.s32.totalorder %s219, 0
      %s222 = sadd.s32 %s221, 1
      %s223 = scalar_select %p220, %s221, %s222
      %p226 = pneg %p220
      %p227 = scmp.eq.s32.totalorder %s43, 5
      %p228 = por %p226, %p227
      %p229 = scmp.ne.s32.totalorder %s221, %s224
      %p230 = scmp.eq.s32.totalorder %s43, 0
      %p231 = por %p229, %p230
      %p232 = scmp.ne.s32.totalorder %s221, %s224
      %p233 = scmp.eq.s32.totalorder %s48, 5
      %p234 = por %p232, %p233
      %p235 = scmp.ne.s32.totalorder %s224, %s225
      %p236 = scmp.eq.s32.totalorder %s48, 0
      %p237 = por %p235, %p236
      %p238 = scmp.ne.s32.totalorder %s224, %s225
      %p239 = scmp.eq.s32.totalorder %s49, 5
      %p240 = por %p238, %p239
      %p242 = scmp.ne.s32.totalorder %s225, %s241
      %p243 = scmp.eq.s32.totalorder %s49, 0
      %p244 = por %p242, %p243
      %s245 = ssub.s32 %s51, %s58
      %p246 = scmp.eq.s32.totalorder %s245, 0
      %s248 = sadd.s32 %s247, 1
      %s249 = scalar_select %p246, %s247, %s248
      %p252 = pneg %p246
      %p253 = scmp.eq.s32.totalorder %s43, 5
      %p254 = por %p252, %p253
      %p255 = scmp.ne.s32.totalorder %s247, %s250
      %p256 = scmp.eq.s32.totalorder %s43, 0
      %p257 = por %p255, %p256
      %p258 = scmp.ne.s32.totalorder %s247, %s250
      %p259 = scmp.eq.s32.totalorder %s48, 5
      %p260 = por %p258, %p259
      %p261 = scmp.ne.s32.totalorder %s250, %s251
      %p262 = scmp.eq.s32.totalorder %s48, 0
      %p263 = por %p261, %p262
      %p264 = scmp.ne.s32.totalorder %s250, %s251
      %p265 = scmp.eq.s32.totalorder %s49, 5
      %p266 = por %p264, %p265
      %p268 = scmp.ne.s32.totalorder %s251, %s267
      %p269 = scmp.eq.s32.totalorder %s49, 0
      %p270 = por %p268, %p269
      %s271 = ssub.s32 %s51, %s58
      %p272 = scmp.eq.s32.totalorder %s271, 0
      %s274 = sadd.s32 %s273, 1
      %s275 = scalar_select %p272, %s273, %s274
      %p278 = pneg %p272
      %p279 = scmp.eq.s32.totalorder %s43, 5
      %p280 = por %p278, %p279
      %p281 = scmp.ne.s32.totalorder %s273, %s276
      %p282 = scmp.eq.s32.totalorder %s43, 0
      %p283 = por %p281, %p282
      %p284 = scmp.ne.s32.totalorder %s273, %s276
      %p285 = scmp.eq.s32.totalorder %s48, 5
      %p286 = por %p284, %p285
      %p287 = scmp.ne.s32.totalorder %s276, %s277
      %p288 = scmp.eq.s32.totalorder %s48, 0
      %p289 = por %p287, %p288
      %p290 = scmp.ne.s32.totalorder %s276, %s277
      %p291 = scmp.eq.s32.totalorder %s49, 5
      %p292 = por %p290, %p291
      %p294 = scmp.ne.s32.totalorder %s277, %s293
      %p295 = scmp.eq.s32.totalorder %s49, 0
      %p296 = por %p294, %p295
      %s297 = ssub.s32 %s51, %s58
      %p298 = scmp.eq.s32.totalorder %s297, 0
      %s300 = sadd.s32 %s299, 1
      %s301 = scalar_select %p298, %s299, %s300
      %p304 = pneg %p298
      %p305 = scmp.eq.s32.totalorder %s43, 5
      %p306 = por %p304, %p305
      %p307 = scmp.ne.s32.totalorder %s299, %s302
      %p308 = scmp.eq.s32.totalorder %s43, 0
      %p309 = por %p307, %p308
      %p310 = scmp.ne.s32.totalorder %s299, %s302
      %p311 = scmp.eq.s32.totalorder %s48, 5
      %p312 = por %p310, %p311
      %p313 = scmp.ne.s32.totalorder %s302, %s303
      %p314 = scmp.eq.s32.totalorder %s48, 0
      %p315 = por %p313, %p314
      %p316 = scmp.ne.s32.totalorder %s302, %s303
      %p317 = scmp.eq.s32.totalorder %s49, 5
      %p318 = por %p316, %p317
      %p320 = scmp.ne.s32.totalorder %s303, %s319
      %p321 = scmp.eq.s32.totalorder %s49, 0
      %p322 = por %p320, %p321
      %s323 = ssub.s32 %s51, %s58
      %p324 = scmp.eq.s32.totalorder %s323, 0
      %s326 = sadd.s32 %s325, 1
      %s327 = scalar_select %p324, %s325, %s326
      %p330 = pneg %p324
      %p331 = scmp.eq.s32.totalorder %s43, 5
      %p332 = por %p330, %p331
      %p333 = scmp.ne.s32.totalorder %s325, %s328
      %p334 = scmp.eq.s32.totalorder %s43, 0
      %p335 = por %p333, %p334
      %p336 = scmp.ne.s32.totalorder %s325, %s328
      %p337 = scmp.eq.s32.totalorder %s48, 5
      %p338 = por %p336, %p337
      %p339 = scmp.ne.s32.totalorder %s328, %s329
      %p340 = scmp.eq.s32.totalorder %s48, 0
      %p341 = por %p339, %p340
      %p342 = scmp.ne.s32.totalorder %s328, %s329
      %p343 = scmp.eq.s32.totalorder %s49, 5
      %p344 = por %p342, %p343
      %p346 = scmp.ne.s32.totalorder %s329, %s345
      %p347 = scmp.eq.s32.totalorder %s49, 0
      %p348 = por %p346, %p347
      %s349 = ssub.s32 %s51, %s58
      %p350 = scmp.eq.s32.totalorder %s349, 0
      %s352 = sadd.s32 %s351, 1
      %s353 = scalar_select %p350, %s351, %s352
      %p356 = pneg %p350
      %p357 = scmp.eq.s32.totalorder %s43, 5
      %p358 = por %p356, %p357
      %p359 = scmp.ne.s32.totalorder %s351, %s354
      %p360 = scmp.eq.s32.totalorder %s43, 0
      %p361 = por %p359, %p360
      %p362 = scmp.ne.s32.totalorder %s351, %s354
      %p363 = scmp.eq.s32.totalorder %s48, 5
      %p364 = por %p362, %p363
      %p365 = scmp.ne.s32.totalorder %s354, %s355
      %p366 = scmp.eq.s32.totalorder %s48, 0
      %p367 = por %p365, %p366
      %p368 = scmp.ne.s32.totalorder %s354, %s355
      %p369 = scmp.eq.s32.totalorder %s49, 5
      %p370 = por %p368, %p369
      %p372 = scmp.ne.s32.totalorder %s355, %s371
      %p373 = scmp.eq.s32.totalorder %s49, 0
      %p374 = por %p372, %p373
      %s375 = ssub.s32 %s51, %s58
      %p376 = scmp.eq.s32.totalorder %s375, 0
      %s378 = sadd.s32 %s377, 1
      %s379 = scalar_select %p376, %s377, %s378
      %p382 = pneg %p376
      %p383 = scmp.eq.s32.totalorder %s43, 5
      %p384 = por %p382, %p383
      %p385 = scmp.ne.s32.totalorder %s377, %s380
      %p386 = scmp.eq.s32.totalorder %s43, 0
      %p387 = por %p385, %p386
      %p388 = scmp.ne.s32.totalorder %s377, %s380
      %p389 = scmp.eq.s32.totalorder %s48, 5
      %p390 = por %p388, %p389
      %p391 = scmp.ne.s32.totalorder %s380, %s381
      %p392 = scmp.eq.s32.totalorder %s48, 0
      %p393 = por %p391, %p392
      %p394 = scmp.ne.s32.totalorder %s380, %s381
      %p395 = scmp.eq.s32.totalorder %s49, 5
      %p396 = por %p394, %p395
      %p398 = scmp.ne.s32.totalorder %s381, %s397
      %p399 = scmp.eq.s32.totalorder %s49, 0
      %p400 = por %p398, %p399
      %s401 = ssub.s32 %s51, %s58
      %p402 = scmp.eq.s32.totalorder %s401, 0
      %s404 = sadd.s32 %s403, 1
      %s405 = scalar_select %p402, %s403, %s404
      %p408 = pneg %p402
      %p409 = scmp.eq.s32.totalorder %s43, 5
      %p410 = por %p408, %p409
      %p411 = scmp.ne.s32.totalorder %s403, %s406
      %p412 = scmp.eq.s32.totalorder %s43, 0
      %p413 = por %p411, %p412
      %p414 = scmp.ne.s32.totalorder %s403, %s406
      %p415 = scmp.eq.s32.totalorder %s48, 5
      %p416 = por %p414, %p415
      %p417 = scmp.ne.s32.totalorder %s406, %s407
      %p418 = scmp.eq.s32.totalorder %s48, 0
      %p419 = por %p417, %p418
      %p420 = scmp.ne.s32.totalorder %s406, %s407
      %p421 = scmp.eq.s32.totalorder %s49, 5
      %p422 = por %p420, %p421
      %p424 = scmp.ne.s32.totalorder %s407, %s423
      %p425 = scmp.eq.s32.totalorder %s49, 0
      %p426 = por %p424, %p425
      %s427 = ssub.s32 %s51, %s58
      %p428 = scmp.eq.s32.totalorder %s427, 0
      %s430 = sadd.s32 %s429, 1
      %s431 = scalar_select %p428, %s429, %s430
      %p434 = pneg %p428
      %p435 = scmp.eq.s32.totalorder %s43, 5
      %p436 = por %p434, %p435
      %p437 = scmp.ne.s32.totalorder %s429, %s432
      %p438 = scmp.eq.s32.totalorder %s43, 0
      %p439 = por %p437, %p438
      %p440 = scmp.ne.s32.totalorder %s429, %s432
      %p441 = scmp.eq.s32.totalorder %s48, 5
      %p442 = por %p440, %p441
      %p443 = scmp.ne.s32.totalorder %s432, %s433
      %p444 = scmp.eq.s32.totalorder %s48, 0
      %p445 = por %p443, %p444
      %p446 = scmp.ne.s32.totalorder %s432, %s433
      %p447 = scmp.eq.s32.totalorder %s49, 5
      %p448 = por %p446, %p447
      %p450 = scmp.ne.s32.totalorder %s433, %s449
      %p451 = scmp.eq.s32.totalorder %s49, 0
      %p452 = por %p450, %p451
      %s453 = ssub.s32 %s51, %s58
      %p454 = scmp.eq.s32.totalorder %s453, 0
      %s456 = sadd.s32 %s455, 1
      %s457 = scalar_select %p454, %s455, %s456
      %p460 = pneg %p454
      %p461 = scmp.eq.s32.totalorder %s43, 5
      %p462 = por %p460, %p461
      %p463 = scmp.ne.s32.totalorder %s455, %s458
      %p464 = scmp.eq.s32.totalorder %s43, 0
      %p465 = por %p463, %p464
      %p466 = scmp.ne.s32.totalorder %s455, %s458
      %p467 = scmp.eq.s32.totalorder %s48, 5
      %p468 = por %p466, %p467
      %p469 = scmp.ne.s32.totalorder %s458, %s459
      %p470 = scmp.eq.s32.totalorder %s48, 0
      %p471 = por %p469, %p470
      %p472 = scmp.ne.s32.totalorder %s458, %s459
      %p473 = scmp.eq.s32.totalorder %s49, 5
      %p474 = por %p472, %p473
      %p476 = scmp.ne.s32.totalorder %s459, %s475
      %p477 = scmp.eq.s32.totalorder %s49, 0
      %p478 = por %p476, %p477
      %s479 = ssub.s32 %s51, %s58
      %p480 = scmp.eq.s32.totalorder %s479, 0
      %s482 = sadd.s32 %s481, 1
      %s483 = scalar_select %p480, %s481, %s482
      %p486 = pneg %p480
      %p487 = scmp.eq.s32.totalorder %s43, 5
      %p488 = por %p486, %p487
      %p489 = scmp.ne.s32.totalorder %s481, %s484
      %p490 = scmp.eq.s32.totalorder %s43, 0
      %p491 = por %p489, %p490
      %p492 = scmp.ne.s32.totalorder %s481, %s484
      %p493 = scmp.eq.s32.totalorder %s48, 5
      %p494 = por %p492, %p493
      %p495 = scmp.ne.s32.totalorder %s484, %s485
      %p496 = scmp.eq.s32.totalorder %s48, 0
      %p497 = por %p495, %p496
      %p498 = scmp.ne.s32.totalorder %s484, %s485
      %p499 = scmp.eq.s32.totalorder %s49, 5
      %p500 = por %p498, %p499
      %p502 = scmp.ne.s32.totalorder %s485, %s501
      %p503 = scmp.eq.s32.totalorder %s49, 0
      %p504 = por %p502, %p503
      %s506 = sadd.s32 %s505, 1
      %p509 = scmp.eq.s32.totalorder %s43, 5
      %p510 = scmp.ne.s32.totalorder %s505, %s507
      %p511 = scmp.eq.s32.totalorder %s43, 0
      %p512 = por %p510, %p511
      %p513 = scmp.ne.s32.totalorder %s505, %s507
      %p514 = scmp.eq.s32.totalorder %s48, 5
      %p515 = por %p513, %p514
      %p516 = scmp.ne.s32.totalorder %s507, %s508
      %p517 = scmp.eq.s32.totalorder %s48, 0
      %p518 = por %p516, %p517
      %p519 = scmp.ne.s32.totalorder %s507, %s508
      %p520 = scmp.eq.s32.totalorder %s49, 5
      %p521 = por %p519, %p520
      %p523 = scmp.ne.s32.totalorder %s508, %s522
      %p524 = scmp.eq.s32.totalorder %s49, 0
      %p525 = por %p523, %p524
      %s527 = sadd.s32 %s526, 1
      %p530 = scmp.eq.s32.totalorder %s43, 5
      %p531 = scmp.ne.s32.totalorder %s526, %s528
      %p532 = scmp.eq.s32.totalorder %s43, 0
      %p533 = por %p531, %p532
      %p534 = scmp.ne.s32.totalorder %s526, %s528
      %p535 = scmp.eq.s32.totalorder %s48, 5
      %p536 = por %p534, %p535
      %p537 = scmp.ne.s32.totalorder %s528, %s529
      %p538 = scmp.eq.s32.totalorder %s48, 0
      %p539 = por %p537, %p538
      %p540 = scmp.ne.s32.totalorder %s528, %s529
      %p541 = scmp.eq.s32.totalorder %s49, 5
      %p542 = por %p540, %p541
      %p544 = scmp.ne.s32.totalorder %s529, %s543
      %p545 = scmp.eq.s32.totalorder %s49, 0
      %p546 = por %p544, %p545
      %s547 = ssub.s32 %s50, %s62
      %p548 = scmp.eq.s32.totalorder %s547, 0
      %s550 = sadd.s32 %s549, 1
      %s551 = scalar_select %p548, %s549, %s550
      %p554 = pneg %p548
      %p555 = scmp.eq.s32.totalorder %s43, 5
      %p556 = por %p554, %p555
      %p557 = scmp.ne.s32.totalorder %s549, %s552
      %p558 = scmp.eq.s32.totalorder %s43, 0
      %p559 = por %p557, %p558
      %p560 = scmp.ne.s32.totalorder %s549, %s552
      %p561 = scmp.eq.s32.totalorder %s48, 5
      %p562 = por %p560, %p561
      %p563 = scmp.ne.s32.totalorder %s552, %s553
      %p564 = scmp.eq.s32.totalorder %s48, 0
      %p565 = por %p563, %p564
      %p566 = scmp.ne.s32.totalorder %s552, %s553
      %p567 = scmp.eq.s32.totalorder %s49, 5
      %p568 = por %p566, %p567
      %p570 = scmp.ne.s32.totalorder %s553, %s569
      %p571 = scmp.eq.s32.totalorder %s49, 0
      %p572 = por %p570, %p571
      %p573 = scmp.le.s32.totalorder 1, %s43
      %p574 = scmp.lt.s32.totalorder %s43, 7
      %p575 = pnand %p573, %p574
      %p576 = pneg %p575
      // Predicated region
      $region9: #{tpu_custom_call.1} parent=5 // pred_check
        _
      $region10: #{tpu_custom_call.1} parent=5 // pred_check_branch
        %578 = sbr.rel (%p575) target = $region12
      $region11: #{tpu_custom_call.1} parent=5 // pred_region
        %s579 = ssub.s32 %s43, 1
        // Predicated region
        $region13: #{tpu_custom_call.1} parent=11 // pred_check
          %p580 = pneg %p518
        $region14: #{tpu_custom_call.1} parent=11 // pred_check_branch
          %582 = sbr.rel (%p580) target = $region16
        $region15: #{tpu_custom_call.1} parent=11 // pred_region
          _
        $region16: #{tpu_custom_call.1} parent=11 // pred_fallthru
          _
        // Predicated region
        $region17: #{tpu_custom_call.1} parent=11 // pred_check
          %p583 = pneg %p539
        $region18: #{tpu_custom_call.1} parent=11 // pred_check_branch
          %585 = sbr.rel (%p583) target = $region20
        $region19: #{tpu_custom_call.1} parent=11 // pred_region
          _
        $region20: #{tpu_custom_call.1} parent=11 // pred_fallthru
          _
      $region12: #{tpu_custom_call.1} parent=5 // pred_fallthru
        _
      %p586 = scmp.lt.s32.totalorder %s43, 6
      // Predicated region
      $region21: #{tpu_custom_call.1} parent=5 // pred_check
        %p587 = pneg %p586
      $region22: #{tpu_custom_call.1} parent=5 // pred_check_branch
        %589 = sbr.rel (%p587) target = $region24
      $region23: #{tpu_custom_call.1} parent=5 // pred_region
        // Predicated region
        $region25: #{tpu_custom_call.1} parent=23 // pred_check
          %p590 = pneg %p75
        $region26: #{tpu_custom_call.1} parent=23 // pred_check_branch
          %592 = sbr.rel (%p590) target = $region28
        $region27: #{tpu_custom_call.1} parent=23 // pred_region
          %s593 = sand.u32 %s65, 1
          %s594 = scalar_lea.sflag [#allocation4], %s593
          %s595 = sand.u32 %s65, 1
          %s596 = smul.addr %s595, 8
          %s597 = scalar_lea.vmem [#allocation3], %s596
          %s599 = ssub.s32 128, 128
          %600 = vsyncadd %s594, %s599
          %s601 = smul.addr %s50, 128
          %s602 = scalar_lea.hbm %s0, %s601
          %s604 = sshll.u32 %s597, 4
          %s605 = int_to_ptr.vmem [resolvable:$true] %s604
          %607 = dma.hbm_to_vmem [thread:$0]  %s602, 128, %s605, %s594
        $region28: #{tpu_custom_call.1} parent=23 // pred_fallthru
          _
        // Predicated region
        $region29: #{tpu_custom_call.1} parent=23 // pred_check
          %p608 = pneg %p101
        $region30: #{tpu_custom_call.1} parent=23 // pred_check_branch
          %610 = sbr.rel (%p608) target = $region32
        $region31: #{tpu_custom_call.1} parent=23 // pred_region
          %p611 = scmp.lt.s32.totalorder %s51, 2
          %s612 = scalar_select %p611, %s51, 2
          %s613 = smul.addr %s612, 4
          %s614 = smul.addr %s613, 4
          %s615 = scalar_lea.vmem %s1, %s614
        $region32: #{tpu_custom_call.1} parent=23 // pred_fallthru
          _
        // Predicated region
        $region33: #{tpu_custom_call.1} parent=23 // pred_check
          %p616 = pneg %p127
        $region34: #{tpu_custom_call.1} parent=23 // pred_check_branch
          %618 = sbr.rel (%p616) target = $region36
        $region35: #{tpu_custom_call.1} parent=23 // pred_region
          %p619 = scmp.lt.s32.totalorder %s51, 2
          %s620 = scalar_select %p619, %s51, 2
          %s621 = smul.addr %s620, 4
          %s622 = smul.addr %s621, 4
          %s623 = scalar_lea.vmem %s2, %s622
        $region36: #{tpu_custom_call.1} parent=23 // pred_fallthru
          _
        // Predicated region
        $region37: #{tpu_custom_call.1} parent=23 // pred_check
          %p624 = pneg %p153
        $region38: #{tpu_custom_call.1} parent=23 // pred_check_branch
          %626 = sbr.rel (%p624) target = $region40
        $region39: #{tpu_custom_call.1} parent=23 // pred_region
          %p627 = scmp.lt.s32.totalorder %s51, 2
          %s628 = scalar_select %p627, %s51, 2
          %s629 = smul.addr %s628, 4
          %s630 = smul.addr %s629, 4
          %s631 = scalar_lea.vmem %s3, %s630
        $region40: #{tpu_custom_call.1} parent=23 // pred_fallthru
          _
        // Predicated region
        $region41: #{tpu_custom_call.1} parent=23 // pred_check
          %p632 = pneg %p179
        $region42: #{tpu_custom_call.1} parent=23 // pred_check_branch
          %634 = sbr.rel (%p632) target = $region44
        $region43: #{tpu_custom_call.1} parent=23 // pred_region
          %s635 = sand.u32 %s43, 1
          %s636 = scalar_lea.sflag [#allocation7], %s635
          %s637 = sand.u32 %s169, 1
          %s638 = scalar_lea.vmem [#allocation6], %s637
          %s640 = ssub.s32 16, 16
          %641 = vsyncadd %s636, %s640
          %s642 = smul.addr %s51, 16
          %s643 = scalar_lea.hbm %s4, %s642
          %s645 = sshll.u32 %s638, 4
          %s646 = int_to_ptr.vmem [resolvable:$true] %s645
          %648 = dma.hbm_to_vmem [thread:$0]  %s643, 16, %s646, %s636
        $region44: #{tpu_custom_call.1} parent=23 // pred_fallthru
          _
        // Predicated region
        $region45: #{tpu_custom_call.1} parent=23 // pred_check
          %p649 = pneg %p205
        $region46: #{tpu_custom_call.1} parent=23 // pred_check_branch
          %651 = sbr.rel (%p649) target = $region48
        $region47: #{tpu_custom_call.1} parent=23 // pred_region
          %s652 = sand.u32 %s43, 1
          %s653 = scalar_lea.sflag [#allocation7], %s652
          %s654 = sand.u32 %s195, 1
          %s655 = scalar_lea.vmem [#allocation8], %s654
          %s657 = ssub.s32 16, 16
          %658 = vsyncadd %s653, %s657
          %s659 = smul.addr %s51, 16
          %s660 = scalar_lea.hbm %s5, %s659
          %s662 = sshll.u32 %s655, 4
          %s663 = int_to_ptr.vmem [resolvable:$true] %s662
          %665 = dma.hbm_to_vmem [thread:$0]  %s660, 16, %s663, %s653
        $region48: #{tpu_custom_call.1} parent=23 // pred_fallthru
          _
        // Predicated region
        $region49: #{tpu_custom_call.1} parent=23 // pred_check
          %p666 = pneg %p231
        $region50: #{tpu_custom_call.1} parent=23 // pred_check_branch
          %668 = sbr.rel (%p666) target = $region52
        $region51: #{tpu_custom_call.1} parent=23 // pred_region
          %s669 = sand.u32 %s43, 1
          %s670 = scalar_lea.sflag [#allocation10], %s669
          %s671 = sand.u32 %s221, 1
          %s672 = scalar_lea.vmem [#allocation9], %s671
          %s674 = ssub.s32 16, 16
          %675 = vsyncadd %s670, %s674
          %s676 = smul.addr %s51, 16
          %s677 = scalar_lea.hbm %s6, %s676
          %s679 = sshll.u32 %s672, 4
          %s680 = int_to_ptr.vmem [resolvable:$true] %s679
          %682 = dma.hbm_to_vmem [thread:$0]  %s677, 16, %s680, %s670
        $region52: #{tpu_custom_call.1} parent=23 // pred_fallthru
          _
        // Predicated region
        $region53: #{tpu_custom_call.1} parent=23 // pred_check
          %p683 = pneg %p257
        $region54: #{tpu_custom_call.1} parent=23 // pred_check_branch
          %685 = sbr.rel (%p683) target = $region56
        $region55: #{tpu_custom_call.1} parent=23 // pred_region
          %p686 = scmp.lt.s32.totalorder %s51, 2
          %s687 = scalar_select %p686, %s51, 2
          %s688 = smul.addr %s687, 4
          %s689 = smul.addr %s688, 4
          %s690 = scalar_lea.vmem %s7, %s689
        $region56: #{tpu_custom_call.1} parent=23 // pred_fallthru
          _
        // Predicated region
        $region57: #{tpu_custom_call.1} parent=23 // pred_check
          %p691 = pneg %p283
        $region58: #{tpu_custom_call.1} parent=23 // pred_check_branch
          %693 = sbr.rel (%p691) target = $region60
        $region59: #{tpu_custom_call.1} parent=23 // pred_region
          %s694 = sand.u32 %s43, 1
          %s695 = scalar_lea.sflag [#allocation10], %s694
          %s696 = sand.u32 %s273, 1
          %s697 = scalar_lea.vmem [#allocation11], %s696
          %s699 = ssub.s32 16, 16
          %700 = vsyncadd %s695, %s699
          %s701 = smul.addr %s51, 16
          %s702 = scalar_lea.hbm %s8, %s701
          %s704 = sshll.u32 %s697, 4
          %s705 = int_to_ptr.vmem [resolvable:$true] %s704
          %707 = dma.hbm_to_vmem [thread:$0]  %s702, 16, %s705, %s695
        $region60: #{tpu_custom_call.1} parent=23 // pred_fallthru
          _
        // Predicated region
        $region61: #{tpu_custom_call.1} parent=23 // pred_check
          %p708 = pneg %p309
        $region62: #{tpu_custom_call.1} parent=23 // pred_check_branch
          %710 = sbr.rel (%p708) target = $region64
        $region63: #{tpu_custom_call.1} parent=23 // pred_region
          %s711 = sand.u32 %s43, 1
          %s712 = scalar_lea.sflag [#allocation13], %s711
          %s713 = sand.u32 %s299, 1
          %s714 = scalar_lea.vmem [#allocation12], %s713
          %s716 = ssub.s32 16, 16
          %717 = vsyncadd %s712, %s716
          %s718 = smul.addr %s51, 16
          %s719 = scalar_lea.hbm %s9, %s718
          %s721 = sshll.u32 %s714, 4
          %s722 = int_to_ptr.vmem [resolvable:$true] %s721
          %724 = dma.hbm_to_vmem [thread:$0]  %s719, 16, %s722, %s712
        $region64: #{tpu_custom_call.1} parent=23 // pred_fallthru
          _
        // Predicated region
        $region65: #{tpu_custom_call.1} parent=23 // pred_check
          %p725 = pneg %p335
        $region66: #{tpu_custom_call.1} parent=23 // pred_check_branch
          %727 = sbr.rel (%p725) target = $region68
        $region67: #{tpu_custom_call.1} parent=23 // pred_region
          %s728 = sand.u32 %s43, 1
          %s729 = scalar_lea.sflag [#allocation13], %s728
          %s730 = sand.u32 %s325, 1
          %s731 = scalar_lea.vmem [#allocation14], %s730
          %s733 = ssub.s32 16, 16
          %734 = vsyncadd %s729, %s733
          %s735 = smul.addr %s51, 16
          %s736 = scalar_lea.hbm %s10, %s735
          %s738 = sshll.u32 %s731, 4
          %s739 = int_to_ptr.vmem [resolvable:$true] %s738
          %741 = dma.hbm_to_vmem [thread:$0]  %s736, 16, %s739, %s729
        $region68: #{tpu_custom_call.1} parent=23 // pred_fallthru
          _
        // Predicated region
        $region69: #{tpu_custom_call.1} parent=23 // pred_check
          %p742 = pneg %p361
        $region70: #{tpu_custom_call.1} parent=23 // pred_check_branch
          %744 = sbr.rel (%p742) target = $region72
        $region71: #{tpu_custom_call.1} parent=23 // pred_region
          %p745 = scmp.lt.s32.totalorder %s51, 2
          %s746 = scalar_select %p745, %s51, 2
          %s747 = smul.addr %s746, 4
          %s748 = smul.addr %s747, 4
          %s749 = scalar_lea.vmem %s11, %s748
        $region72: #{tpu_custom_call.1} parent=23 // pred_fallthru
          _
        // Predicated region
        $region73: #{tpu_custom_call.1} parent=23 // pred_check
          %p750 = pneg %p387
        $region74: #{tpu_custom_call.1} parent=23 // pred_check_branch
          %752 = sbr.rel (%p750) target = $region76
        $region75: #{tpu_custom_call.1} parent=23 // pred_region
          %s753 = sand.u32 %s377, 1
          %s754 = scalar_lea.sflag [#allocation16], %s753
          %s755 = sand.u32 %s377, 1
          %s756 = scalar_lea.vmem [#allocation15], %s755
          %s758 = ssub.s32 16, 16
          %759 = vsyncadd %s754, %s758
          %s760 = smul.addr %s51, 16
          %s761 = scalar_lea.hbm %s12, %s760
          %s763 = sshll.u32 %s756, 4
          %s764 = int_to_ptr.vmem [resolvable:$true] %s763
          %766 = dma.hbm_to_vmem [thread:$0]  %s761, 16, %s764, %s754
        $region76: #{tpu_custom_call.1} parent=23 // pred_fallthru
          _
        // Predicated region
        $region77: #{tpu_custom_call.1} parent=23 // pred_check
          %p767 = pneg %p413
        $region78: #{tpu_custom_call.1} parent=23 // pred_check_branch
          %769 = sbr.rel (%p767) target = $region80
        $region79: #{tpu_custom_call.1} parent=23 // pred_region
          %p770 = scmp.lt.s32.totalorder %s51, 2
          %s771 = scalar_select %p770, %s51, 2
          %s772 = smul.addr %s771, 16
          %s773 = smul.addr %s772, 4
          %s774 = scalar_lea.vmem %s13, %s773
        $region80: #{tpu_custom_call.1} parent=23 // pred_fallthru
          _
        // Predicated region
        $region81: #{tpu_custom_call.1} parent=23 // pred_check
          %p775 = pneg %p439
        $region82: #{tpu_custom_call.1} parent=23 // pred_check_branch
          %777 = sbr.rel (%p775) target = $region84
        $region83: #{tpu_custom_call.1} parent=23 // pred_region
          %p778 = scmp.lt.s32.totalorder %s51, 2
          %s779 = scalar_select %p778, %s51, 2
          %s780 = scalar_lea.vmem %s14, %s779
        $region84: #{tpu_custom_call.1} parent=23 // pred_fallthru
          _
        // Predicated region
        $region85: #{tpu_custom_call.1} parent=23 // pred_check
          %p781 = pneg %p465
        $region86: #{tpu_custom_call.1} parent=23 // pred_check_branch
          %783 = sbr.rel (%p781) target = $region88
        $region87: #{tpu_custom_call.1} parent=23 // pred_region
          %p784 = scmp.lt.s32.totalorder %s51, 2
          %s785 = scalar_select %p784, %s51, 2
          %s786 = scalar_lea.vmem %s15, %s785
        $region88: #{tpu_custom_call.1} parent=23 // pred_fallthru
          _
        // Predicated region
        $region89: #{tpu_custom_call.1} parent=23 // pred_check
          %p787 = pneg %p491
        $region90: #{tpu_custom_call.1} parent=23 // pred_check_branch
          %789 = sbr.rel (%p787) target = $region92
        $region91: #{tpu_custom_call.1} parent=23 // pred_region
          %p790 = scmp.lt.s32.totalorder %s51, 2
          %s791 = scalar_select %p790, %s51, 2
          %s792 = scalar_lea.vmem %s16, %s791
        $region92: #{tpu_custom_call.1} parent=23 // pred_fallthru
          _
      $region24: #{tpu_custom_call.1} parent=5 // pred_fallthru
        _
      %p793 = scmp.le.s32.totalorder 1, %s43
      %p794 = scmp.lt.s32.totalorder %s43, 7
      %p795 = pnand %p793, %p794
      %p796 = pneg %p795
      // Predicated region
      $region93: #{tpu_custom_call.1} parent=5 // pred_check
        _
      $region94: #{tpu_custom_call.1} parent=5 // pred_check_branch
        %798 = sbr.rel (%p795) target = $region96
      $region95: #{tpu_custom_call.1} parent=5 // pred_region
        %s799 = ssub.s32 %s43, 1
        %s800 = sand.u32 %s68, 1
        %s801 = scalar_lea.sflag [#allocation4], %s800
        %s802 = sand.u32 %s68, 1
        %s803 = smul.addr %s802, 8
        %s804 = scalar_lea.vmem [#allocation3], %s803
        // Predicated region
        $region97: #{tpu_custom_call.1} parent=95 // pred_check
          %p805 = pneg %p81
        $region98: #{tpu_custom_call.1} parent=95 // pred_check_branch
          %807 = sbr.rel (%p805) target = $region100
        $region99: #{tpu_custom_call.1} parent=95 // pred_region
          %808 = dma.done %s801, 128
        $region100: #{tpu_custom_call.1} parent=95 // pred_fallthru
          _
        %s809 = sand.u32 %s48, 1
        %s810 = scalar_lea.sflag [#allocation7], %s809
        %s811 = sand.u32 %s172, 1
        %s812 = scalar_lea.vmem [#allocation6], %s811
        // Predicated region
        $region101: #{tpu_custom_call.1} parent=95 // pred_check
          %p813 = pneg %p185
        $region102: #{tpu_custom_call.1} parent=95 // pred_check_branch
          %815 = sbr.rel (%p813) target = $region104
        $region103: #{tpu_custom_call.1} parent=95 // pred_region
          %816 = dma.done %s810, 16
        $region104: #{tpu_custom_call.1} parent=95 // pred_fallthru
          _
        %s817 = sand.u32 %s48, 1
        %s818 = scalar_lea.sflag [#allocation7], %s817
        %s819 = sand.u32 %s198, 1
        %s820 = scalar_lea.vmem [#allocation8], %s819
        // Predicated region
        $region105: #{tpu_custom_call.1} parent=95 // pred_check
          %p821 = pneg %p211
        $region106: #{tpu_custom_call.1} parent=95 // pred_check_branch
          %823 = sbr.rel (%p821) target = $region108
        $region107: #{tpu_custom_call.1} parent=95 // pred_region
          %824 = dma.done %s818, 16
        $region108: #{tpu_custom_call.1} parent=95 // pred_fallthru
          _
        %s825 = sand.u32 %s48, 1
        %s826 = scalar_lea.sflag [#allocation10], %s825
        %s827 = sand.u32 %s224, 1
        %s828 = scalar_lea.vmem [#allocation9], %s827
        // Predicated region
        $region109: #{tpu_custom_call.1} parent=95 // pred_check
          %p829 = pneg %p237
        $region110: #{tpu_custom_call.1} parent=95 // pred_check_branch
          %831 = sbr.rel (%p829) target = $region112
        $region111: #{tpu_custom_call.1} parent=95 // pred_region
          %832 = dma.done %s826, 16
        $region112: #{tpu_custom_call.1} parent=95 // pred_fallthru
          _
        %s833 = sand.u32 %s48, 1
        %s834 = scalar_lea.sflag [#allocation10], %s833
        %s835 = sand.u32 %s276, 1
        %s836 = scalar_lea.vmem [#allocation11], %s835
        // Predicated region
        $region113: #{tpu_custom_call.1} parent=95 // pred_check
          %p837 = pneg %p289
        $region114: #{tpu_custom_call.1} parent=95 // pred_check_branch
          %839 = sbr.rel (%p837) target = $region116
        $region115: #{tpu_custom_call.1} parent=95 // pred_region
          %840 = dma.done %s834, 16
        $region116: #{tpu_custom_call.1} parent=95 // pred_fallthru
          _
        %s841 = sand.u32 %s48, 1
        %s842 = scalar_lea.sflag [#allocation13], %s841
        %s843 = sand.u32 %s302, 1
        %s844 = scalar_lea.vmem [#allocation12], %s843
        // Predicated region
        $region117: #{tpu_custom_call.1} parent=95 // pred_check
          %p845 = pneg %p315
        $region118: #{tpu_custom_call.1} parent=95 // pred_check_branch
          %847 = sbr.rel (%p845) target = $region120
        $region119: #{tpu_custom_call.1} parent=95 // pred_region
          %848 = dma.done %s842, 16
        $region120: #{tpu_custom_call.1} parent=95 // pred_fallthru
          _
        %s849 = sand.u32 %s48, 1
        %s850 = scalar_lea.sflag [#allocation13], %s849
        %s851 = sand.u32 %s328, 1
        %s852 = scalar_lea.vmem [#allocation14], %s851
        // Predicated region
        $region121: #{tpu_custom_call.1} parent=95 // pred_check
          %p853 = pneg %p341
        $region122: #{tpu_custom_call.1} parent=95 // pred_check_branch
          %855 = sbr.rel (%p853) target = $region124
        $region123: #{tpu_custom_call.1} parent=95 // pred_region
          %856 = dma.done %s850, 16
        $region124: #{tpu_custom_call.1} parent=95 // pred_fallthru
          _
        %s857 = sand.u32 %s380, 1
        %s858 = scalar_lea.sflag [#allocation16], %s857
        %s859 = sand.u32 %s380, 1
        %s860 = scalar_lea.vmem [#allocation15], %s859
        // Predicated region
        $region125: #{tpu_custom_call.1} parent=95 // pred_check
          %p861 = pneg %p393
        $region126: #{tpu_custom_call.1} parent=95 // pred_check_branch
          %863 = sbr.rel (%p861) target = $region128
        $region127: #{tpu_custom_call.1} parent=95 // pred_region
          %864 = dma.done %s858, 16
        $region128: #{tpu_custom_call.1} parent=95 // pred_fallthru
          _
        %s865 = sand.u32 %s68, 1
        %s866 = scalar_lea.sflag [#allocation4], %s865
        %s867 = sand.u32 %s68, 1
        %s868 = smul.addr %s867, 8
        %s869 = scalar_lea.vmem [#allocation3], %s868
        %p870 = pneg %p81
        %p871 = pneg %p78
        %p872 = scmp.lt.s32.totalorder %s53, 2
        %s873 = scalar_select %p872, %s53, 2
        %s874 = smul.addr %s873, 4
        %s875 = smul.addr %s874, 4
        %s876 = scalar_lea.vmem %s1, %s875
        %p877 = pneg %p107
        %p878 = pneg %p104
        %p879 = scmp.lt.s32.totalorder %s53, 2
        %s880 = scalar_select %p879, %s53, 2
        %s881 = smul.addr %s880, 4
        %s882 = smul.addr %s881, 4
        %s883 = scalar_lea.vmem %s2, %s882
        %p884 = pneg %p133
        %p885 = pneg %p130
        %p886 = scmp.lt.s32.totalorder %s53, 2
        %s887 = scalar_select %p886, %s53, 2
        %s888 = smul.addr %s887, 4
        %s889 = smul.addr %s888, 4
        %s890 = scalar_lea.vmem %s3, %s889
        %p891 = pneg %p159
        %p892 = pneg %p156
        %s893 = sand.u32 %s48, 1
        %s894 = scalar_lea.sflag [#allocation7], %s893
        %s895 = sand.u32 %s172, 1
        %s896 = scalar_lea.vmem [#allocation6], %s895
        %p897 = pneg %p185
        %p898 = pneg %p182
        %s899 = sand.u32 %s48, 1
        %s900 = scalar_lea.sflag [#allocation7], %s899
        %s901 = sand.u32 %s198, 1
        %s902 = scalar_lea.vmem [#allocation8], %s901
        %p903 = pneg %p211
        %p904 = pneg %p208
        %s905 = sand.u32 %s48, 1
        %s906 = scalar_lea.sflag [#allocation10], %s905
        %s907 = sand.u32 %s224, 1
        %s908 = scalar_lea.vmem [#allocation9], %s907
        %p909 = pneg %p237
        %p910 = pneg %p234
        %p911 = scmp.lt.s32.totalorder %s53, 2
        %s912 = scalar_select %p911, %s53, 2
        %s913 = smul.addr %s912, 4
        %s914 = smul.addr %s913, 4
        %s915 = scalar_lea.vmem %s7, %s914
        %p916 = pneg %p263
        %p917 = pneg %p260
        %s918 = sand.u32 %s48, 1
        %s919 = scalar_lea.sflag [#allocation10], %s918
        %s920 = sand.u32 %s276, 1
        %s921 = scalar_lea.vmem [#allocation11], %s920
        %p922 = pneg %p289
        %p923 = pneg %p286
        %s924 = sand.u32 %s48, 1
        %s925 = scalar_lea.sflag [#allocation13], %s924
        %s926 = sand.u32 %s302, 1
        %s927 = scalar_lea.vmem [#allocation12], %s926
        %p928 = pneg %p315
        %p929 = pneg %p312
        %s930 = sand.u32 %s48, 1
        %s931 = scalar_lea.sflag [#allocation13], %s930
        %s932 = sand.u32 %s328, 1
        %s933 = scalar_lea.vmem [#allocation14], %s932
        %p934 = pneg %p341
        %p935 = pneg %p338
        %p936 = scmp.lt.s32.totalorder %s53, 2
        %s937 = scalar_select %p936, %s53, 2
        %s938 = smul.addr %s937, 4
        %s939 = smul.addr %s938, 4
        %s940 = scalar_lea.vmem %s11, %s939
        %p941 = pneg %p367
        %p942 = pneg %p364
        %s943 = sand.u32 %s380, 1
        %s944 = scalar_lea.sflag [#allocation16], %s943
        %s945 = sand.u32 %s380, 1
        %s946 = scalar_lea.vmem [#allocation15], %s945
        %p947 = pneg %p393
        %p948 = pneg %p390
        %p949 = scmp.lt.s32.totalorder %s53, 2
        %s950 = scalar_select %p949, %s53, 2
        %s951 = smul.addr %s950, 16
        %s952 = smul.addr %s951, 4
        %s953 = scalar_lea.vmem %s13, %s952
        %p954 = pneg %p419
        %p955 = pneg %p416
        %p956 = scmp.lt.s32.totalorder %s53, 2
        %s957 = scalar_select %p956, %s53, 2
        %s958 = scalar_lea.vmem %s14, %s957
        %p959 = pneg %p445
        %p960 = pneg %p442
        %p961 = scmp.lt.s32.totalorder %s53, 2
        %s962 = scalar_select %p961, %s53, 2
        %s963 = scalar_lea.vmem %s15, %s962
        %p964 = pneg %p471
        %p965 = pneg %p468
        %p966 = scmp.lt.s32.totalorder %s53, 2
        %s967 = scalar_select %p966, %s53, 2
        %s968 = scalar_lea.vmem %s16, %s967
        %p969 = pneg %p497
        %p970 = pneg %p494
        %p971 = pneg %p518
        %p972 = pneg %p515
        %p973 = pneg %p539
        %p974 = pneg %p536
        %p975 = pneg %p565
        %p976 = pneg %p562
        %s977 = sand.u32 %s552, 1
        %s978 = scalar_lea.sflag [#allocation5], %s977
        %s979 = sand.u32 %s552, 1
        %s980 = smul.addr %s979, 8
        %s981 = scalar_lea.vmem [#allocation17], %s980
        %p982 = scmp.lt.s32.totalorder %s53, 2
        %s983 = scalar_select %p982, %s53, 2
        %s984 = smul.addr %s983, 4
        %s985 = smul.addr %s984, 4
        %s986 = scalar_lea.vmem %s1, %s985
        %p987 = scmp.lt.s32.totalorder %s53, 2
        %s988 = scalar_select %p987, %s53, 2
        %s989 = smul.addr %s988, 4
        %s990 = smul.addr %s989, 4
        %s991 = scalar_lea.vmem %s2, %s990
        %p992 = scmp.lt.s32.totalorder %s53, 2
        %s993 = scalar_select %p992, %s53, 2
        %s994 = smul.addr %s993, 4
        %s995 = smul.addr %s994, 4
        %s996 = scalar_lea.vmem %s3, %s995
        %p997 = scmp.lt.s32.totalorder %s53, 2
        %s998 = scalar_select %p997, %s53, 2
        %s999 = smul.addr %s998, 4
        %s1000 = smul.addr %s999, 4
        %s1001 = scalar_lea.vmem %s7, %s1000
        %p1002 = scmp.lt.s32.totalorder %s53, 2
        %s1003 = scalar_select %p1002, %s53, 2
        %s1004 = smul.addr %s1003, 4
        %s1005 = smul.addr %s1004, 4
        %s1006 = scalar_lea.vmem %s11, %s1005
        %p1007 = scmp.lt.s32.totalorder %s53, 2
        %s1008 = scalar_select %p1007, %s53, 2
        %s1009 = smul.addr %s1008, 16
        %s1010 = smul.addr %s1009, 4
        %s1011 = scalar_lea.vmem %s13, %s1010
        %p1012 = scmp.lt.s32.totalorder %s53, 2
        %s1013 = scalar_select %p1012, %s53, 2
        %s1014 = scalar_lea.vmem %s14, %s1013
        %p1015 = scmp.lt.s32.totalorder %s53, 2
        %s1016 = scalar_select %p1015, %s53, 2
        %s1017 = scalar_lea.vmem %s15, %s1016
        %p1018 = scmp.lt.s32.totalorder %s53, 2
        %s1019 = scalar_select %p1018, %s53, 2
        %s1020 = scalar_lea.vmem %s16, %s1019
        %p1022 = scmp.eq.s32.totalorder %s53, 0
        // Predicated region
        $region129: #{tpu_custom_call.1} parent=95 // pred_check
          %p1023 = pneg %p1022
        $region130: #{tpu_custom_call.1} parent=95 // pred_check_branch
          %1025 = sbr.rel (%p1023) target = $region132
        $region131: #{tpu_custom_call.1} parent=95 // pred_region
          %v1026 = vld [vmem:[%s804] sm:$0xff]
          %vm1027 = vcmask 261120
          %1028 = vst.msk [vmem:[#allocation2] sm:$0xff] %vm1027, %v1026
        $region132: #{tpu_custom_call.1} parent=95 // pred_fallthru
          _
        %v1029 = vld [vmem:[#allocation2] sm:$0xff]
        %v1030 = vpack.c.bf16 %v1029, %v1029
        %v1031 = vld [vmem:[%s986] sm:$0xf]
        %v1032 = vld [vmem:[%s986 + $0x4] sm:$0xf]
        %v1033 = vld [vmem:[%s986 + $0x8] sm:$0xf]
        %v1034 = vld [vmem:[%s986 + $0xc] sm:$0xf]
        %v1035 = vld [vmem:[%s812] sm:$0x1]
        %v1037 = vlaneseq
        %v1038 = vshrl.u32 %v1037, 7
        %v1039 = vsub.s32 0, %v1038
        %v1040 = vrot.slane %v1035, %v1039
        %v1046 = vunpack.c.l.b16 %v1031
        %v1047 = vunpack.c.l.b16 %v1032
        %v1048 = vunpack.c.l.b16 %v1033
        %v1049 = vunpack.c.l.b16 %v1034
        %v1050 = vpack.c.b16 %v1047, %v1046
        %v1051 = vpack.c.b16 %v1049, %v1048
        %vm1054 = vcmask 261120
        %v1056 = vsel %vm1054, %v1030, 0
        %1058 = vmatprep.subr.bf16.mxu0 0
        %1059 = vmatpush1.bf16.msra.mxu0 %v1050
        %1060 = vmatprep.subr.bf16.mxu0 0
        %1061 = vmatpush1.bf16.msra.mxu0 %v1051
        %1062 = vmatprep.subr.bf16.mxu0 0
        %1063 = vmatpush1.bf16.msra.mxu0 0
        %1064 = vmatprep.subr.bf16.mxu0 0
        %1065 = vmatpush1.bf16.msra.mxu0 0
        %1066 = vmatprep.subr.bf16.mxu0 0
        %1067 = vmatpush1.bf16.msra.mxu0 0
        %1068 = vmatprep.subr.bf16.mxu0 0
        %1069 = vmatpush1.bf16.msra.mxu0 0
        %1070 = vmatprep.subr.bf16.mxu0 0
        %1071 = vmatpush1.bf16.msra.mxu0 0
        %1072 = vmatprep.subr.bf16.mxu0 0
        %1073 = vmatpush1.bf16.msra.mxu0 0
        %1074 = vmatprep.subr.bf16.mxu0 0
        %1075 = vmatpush1.bf16.msra.mxu0 0
        %1076 = vmatprep.subr.bf16.mxu0 0
        %1077 = vmatpush1.bf16.msra.mxu0 0
        %1078 = vmatprep.subr.bf16.mxu0 0
        %1079 = vmatpush1.bf16.msra.mxu0 0
        %1080 = vmatprep.subr.bf16.mxu0 0
        %1081 = vmatpush1.bf16.msra.mxu0 0
        %1082 = vmatprep.subr.bf16.mxu0 0
        %1083 = vmatpush1.bf16.msra.mxu0 0
        %1084 = vmatprep.subr.bf16.mxu0 0
        %1085 = vmatpush1.bf16.msra.mxu0 0
        %1086 = vmatprep.subr.bf16.mxu0 0
        %1087 = vmatpush1.bf16.msra.mxu0 0
        %1088 = vmatprep.subr.bf16.mxu0 0
        %1089 = vmatpush1.bf16.msra.mxu0 0
        %1090 = vmatprep.mubr.bf16.mxu0 0
        %1091 = vmatmul.mubr.bf16.gmra.mrb[0].mxu0 %v1056
        %v1092 = vpop.f32.mrb[0].mxu0
        %v1093 = vadd.f32 %v1040, %v1092
        %v1094 = vpop.f32.mrb[0].mxu0
        %v1095 = vpop.f32.mrb[0].mxu0
        %v1096 = vpop.f32.mrb[0].mxu0
        %1097 = vdwg.mxu0
        %v1098 = vld [vmem:[%s991] sm:$0xf]
        %v1099 = vld [vmem:[%s991 + $0x4] sm:$0xf]
        %v1100 = vld [vmem:[%s991 + $0x8] sm:$0xf]
        %v1101 = vld [vmem:[%s991 + $0xc] sm:$0xf]
        %v1102 = vld [vmem:[%s820] sm:$0x1]
        %v1104 = vlaneseq
        %v1105 = vshrl.u32 %v1104, 7
        %v1106 = vsub.s32 0, %v1105
        %v1107 = vrot.slane %v1102, %v1106
        %v1113 = vunpack.c.l.b16 %v1098
        %v1114 = vunpack.c.l.b16 %v1099
        %v1115 = vunpack.c.l.b16 %v1100
        %v1116 = vunpack.c.l.b16 %v1101
        %v1117 = vpack.c.b16 %v1114, %v1113
        %v1118 = vpack.c.b16 %v1116, %v1115
        %1121 = vmatprep.subr.bf16.mxu0 0
        %1122 = vmatpush1.bf16.msra.mxu0 %v1117
        %1123 = vmatprep.subr.bf16.mxu0 0
        %1124 = vmatpush1.bf16.msra.mxu0 %v1118
        %1125 = vmatprep.subr.bf16.mxu0 0
        %1126 = vmatpush1.bf16.msra.mxu0 0
        %1127 = vmatprep.subr.bf16.mxu0 0
        %1128 = vmatpush1.bf16.msra.mxu0 0
        %1129 = vmatprep.subr.bf16.mxu0 0
        %1130 = vmatpush1.bf16.msra.mxu0 0
        %1131 = vmatprep.subr.bf16.mxu0 0
        %1132 = vmatpush1.bf16.msra.mxu0 0
        %1133 = vmatprep.subr.bf16.mxu0 0
        %1134 = vmatpush1.bf16.msra.mxu0 0
        %1135 = vmatprep.subr.bf16.mxu0 0
        %1136 = vmatpush1.bf16.msra.mxu0 0
        %1137 = vmatprep.subr.bf16.mxu0 0
        %1138 = vmatpush1.bf16.msra.mxu0 0
        %1139 = vmatprep.subr.bf16.mxu0 0
        %1140 = vmatpush1.bf16.msra.mxu0 0
        %1141 = vmatprep.subr.bf16.mxu0 0
        %1142 = vmatpush1.bf16.msra.mxu0 0
        %1143 = vmatprep.subr.bf16.mxu0 0
        %1144 = vmatpush1.bf16.msra.mxu0 0
        %1145 = vmatprep.subr.bf16.mxu0 0
        %1146 = vmatpush1.bf16.msra.mxu0 0
        %1147 = vmatprep.subr.bf16.mxu0 0
        %1148 = vmatpush1.bf16.msra.mxu0 0
        %1149 = vmatprep.subr.bf16.mxu0 0
        %1150 = vmatpush1.bf16.msra.mxu0 0
        %1151 = vmatprep.subr.bf16.mxu0 0
        %1152 = vmatpush1.bf16.msra.mxu0 0
        %1153 = vmatprep.mubr.bf16.mxu0 0
        %1154 = vmatmul.mubr.bf16.gmra.mrb[0].mxu0 %v1056
        %v1155 = vpop.f32.mrb[0].mxu0
        %v1156 = vadd.f32 %v1107, %v1155
        %v1157 = vpop.f32.mrb[0].mxu0
        %v1158 = vpop.f32.mrb[0].mxu0
        %v1159 = vpop.f32.mrb[0].mxu0
        %1160 = vdwg.mxu0
        %v1161 = vld [vmem:[%s996] sm:$0xf]
        %v1162 = vld [vmem:[%s996 + $0x4] sm:$0xf]
        %v1163 = vld [vmem:[%s996 + $0x8] sm:$0xf]
        %v1164 = vld [vmem:[%s996 + $0xc] sm:$0xf]
        %v1165 = vld [vmem:[%s828] sm:$0x1]
        %v1167 = vlaneseq
        %v1168 = vshrl.u32 %v1167, 7
        %v1169 = vsub.s32 0, %v1168
        %v1170 = vrot.slane %v1165, %v1169
        %v1176 = vunpack.c.l.b16 %v1161
        %v1177 = vunpack.c.l.b16 %v1162
        %v1178 = vunpack.c.l.b16 %v1163
        %v1179 = vunpack.c.l.b16 %v1164
        %v1180 = vpack.c.b16 %v1177, %v1176
        %v1181 = vpack.c.b16 %v1179, %v1178
        %1184 = vmatprep.subr.bf16.mxu0 0
        %1185 = vmatpush1.bf16.msra.mxu0 %v1180
        %1186 = vmatprep.subr.bf16.mxu0 0
        %1187 = vmatpush1.bf16.msra.mxu0 %v1181
        %1188 = vmatprep.subr.bf16.mxu0 0
        %1189 = vmatpush1.bf16.msra.mxu0 0
        %1190 = vmatprep.subr.bf16.mxu0 0
        %1191 = vmatpush1.bf16.msra.mxu0 0
        %1192 = vmatprep.subr.bf16.mxu0 0
        %1193 = vmatpush1.bf16.msra.mxu0 0
        %1194 = vmatprep.subr.bf16.mxu0 0
        %1195 = vmatpush1.bf16.msra.mxu0 0
        %1196 = vmatprep.subr.bf16.mxu0 0
        %1197 = vmatpush1.bf16.msra.mxu0 0
        %1198 = vmatprep.subr.bf16.mxu0 0
        %1199 = vmatpush1.bf16.msra.mxu0 0
        %1200 = vmatprep.subr.bf16.mxu0 0
        %1201 = vmatpush1.bf16.msra.mxu0 0
        %1202 = vmatprep.subr.bf16.mxu0 0
        %1203 = vmatpush1.bf16.msra.mxu0 0
        %1204 = vmatprep.subr.bf16.mxu0 0
        %1205 = vmatpush1.bf16.msra.mxu0 0
        %1206 = vmatprep.subr.bf16.mxu0 0
        %1207 = vmatpush1.bf16.msra.mxu0 0
        %1208 = vmatprep.subr.bf16.mxu0 0
        %1209 = vmatpush1.bf16.msra.mxu0 0
        %1210 = vmatprep.subr.bf16.mxu0 0
        %1211 = vmatpush1.bf16.msra.mxu0 0
        %1212 = vmatprep.subr.bf16.mxu0 0
        %1213 = vmatpush1.bf16.msra.mxu0 0
        %1214 = vmatprep.subr.bf16.mxu0 0
        %1215 = vmatpush1.bf16.msra.mxu0 0
        %1216 = vmatprep.mubr.bf16.mxu0 0
        %1217 = vmatmul.mubr.bf16.gmra.mrb[0].mxu0 %v1056
        %v1218 = vpop.f32.mrb[0].mxu0
        %v1219 = vadd.f32 %v1170, %v1218
        %v1220 = vpop.f32.mrb[0].mxu0
        %v1221 = vpop.f32.mrb[0].mxu0
        %v1222 = vpop.f32.mrb[0].mxu0
        %1223 = vdwg.mxu0
        %v1224 = vmul.f32 %v1093, 0.17677669
        %v1225 = vpack.c.bf16 %v1224, %v1224
        %v1226 = vpack.c.bf16 %v1156, %v1156
        %v1228 = vsel %vm1054, %v1225, 0
        %v1231 = vsel %vm1054, %v1226, 0
        %1233 = vmatprep.subr.bf16.mxu0 0
        %1234 = vmatpush1.bf16.xpose.msra.mxu0 %v1231
        %1235 = vmatprep.subr.bf16.mxu0 0
        %1236 = vmatpush1.bf16.xpose.msra.mxu0 0
        %1237 = vmatprep.subr.bf16.mxu0 0
        %1238 = vmatpush1.bf16.xpose.msra.mxu0 0
        %1239 = vmatprep.subr.bf16.mxu0 0
        %1240 = vmatpush1.bf16.xpose.msra.mxu0 0
        %1241 = vmatprep.subr.bf16.mxu0 0
        %1242 = vmatpush1.bf16.xpose.msra.mxu0 0
        %1243 = vmatprep.subr.bf16.mxu0 0
        %1244 = vmatpush1.bf16.xpose.msra.mxu0 0
        %1245 = vmatprep.subr.bf16.mxu0 0
        %1246 = vmatpush1.bf16.xpose.msra.mxu0 0
        %1247 = vmatprep.subr.bf16.mxu0 0
        %1248 = vmatpush1.bf16.xpose.msra.mxu0 0
        %1249 = vmatprep.subr.bf16.mxu0 0
        %1250 = vmatpush1.bf16.xpose.msra.mxu0 0
        %1251 = vmatprep.subr.bf16.mxu0 0
        %1252 = vmatpush1.bf16.xpose.msra.mxu0 0
        %1253 = vmatprep.subr.bf16.mxu0 0
        %1254 = vmatpush1.bf16.xpose.msra.mxu0 0
        %1255 = vmatprep.subr.bf16.mxu0 0
        %1256 = vmatpush1.bf16.xpose.msra.mxu0 0
        %1257 = vmatprep.subr.bf16.mxu0 0
        %1258 = vmatpush1.bf16.xpose.msra.mxu0 0
        %1259 = vmatprep.subr.bf16.mxu0 0
        %1260 = vmatpush1.bf16.xpose.msra.mxu0 0
        %1261 = vmatprep.subr.bf16.mxu0 0
        %1262 = vmatpush1.bf16.xpose.msra.mxu0 0
        %1263 = vmatprep.subr.bf16.mxu0 0
        %1264 = vmatpush1.bf16.xpose.msra.mxu0 0
        %1265 = vmatprep.mubr.bf16.mxu0 0
        %1266 = vmatmul.mubr.bf16.gmra.mrb[0].mxu0 %v1228
        %v1267 = vpop.f32.mrb[0].mxu0
        %v1268 = vadd.f32 0.0, %v1267
        %v1269 = vpop.f32.mrb[0].mxu0
        %v1270 = vpop.f32.mrb[0].mxu0
        %v1271 = vpop.f32.mrb[0].mxu0
        %1272 = vdwg.mxu0
        %vm1273 = vcmask 64512
        %v1274 = vsel %vm1273, %v1268, -inf
        %1275 = vmax.xlane.f32.xlu0 %v1274
        %v1276 = vpop.xlane.xlu0 %1275
        %v1277 = vsub.f32 %v1268, %v1276
        %v1278 = vmul.f32 %v1277, 1.442695
        %v1279 = vpow.pop %v1278
        %v1280 = vsel %vm1273, %v1279, 0.0
        %1281 = vadd.xlane.f32.xlu0 %v1280
        %v1282 = vpop.xlane.xlu0 %1281
        %v1283 = vrcp.pop %v1282
        %v1284 = vmul.f32 %v1279, %v1283
        %v1285 = vpack.c.bf16 %v1284, %v1284
        %v1286 = vpack.c.bf16 %v1219, %v1219
        %v1288 = vsel %vm1273, %v1285, 0
        %vm1290 = vcmask 1043456
        %v1292 = vsel %vm1290, %v1286, 0
        %1294 = vmatprep.subr.bf16.mxu0 0
        %1295 = vmatpush1.bf16.msra.mxu0 %v1292
        %1296 = vmatprep.subr.bf16.mxu0 0
        %1297 = vmatpush1.bf16.msra.mxu0 0
        %1298 = vmatprep.subr.bf16.mxu0 0
        %1299 = vmatpush1.bf16.msra.mxu0 0
        %1300 = vmatprep.subr.bf16.mxu0 0
        %1301 = vmatpush1.bf16.msra.mxu0 0
        %1302 = vmatprep.subr.bf16.mxu0 0
        %1303 = vmatpush1.bf16.msra.mxu0 0
        %1304 = vmatprep.subr.bf16.mxu0 0
        %1305 = vmatpush1.bf16.msra.mxu0 0
        %1306 = vmatprep.subr.bf16.mxu0 0
        %1307 = vmatpush1.bf16.msra.mxu0 0
        %1308 = vmatprep.subr.bf16.mxu0 0
        %1309 = vmatpush1.bf16.msra.mxu0 0
        %1310 = vmatprep.subr.bf16.mxu0 0
        %1311 = vmatpush1.bf16.msra.mxu0 0
        %1312 = vmatprep.subr.bf16.mxu0 0
        %1313 = vmatpush1.bf16.msra.mxu0 0
        %1314 = vmatprep.subr.bf16.mxu0 0
        %1315 = vmatpush1.bf16.msra.mxu0 0
        %1316 = vmatprep.subr.bf16.mxu0 0
        %1317 = vmatpush1.bf16.msra.mxu0 0
        %1318 = vmatprep.subr.bf16.mxu0 0
        %1319 = vmatpush1.bf16.msra.mxu0 0
        %1320 = vmatprep.subr.bf16.mxu0 0
        %1321 = vmatpush1.bf16.msra.mxu0 0
        %1322 = vmatprep.subr.bf16.mxu0 0
        %1323 = vmatpush1.bf16.msra.mxu0 0
        %1324 = vmatprep.subr.bf16.mxu0 0
        %1325 = vmatpush1.bf16.msra.mxu0 0
        %1326 = vmatprep.mubr.bf16.mxu0 0
        %1327 = vmatmul.mubr.bf16.gmra.mrb[0].mxu0 %v1288
        %v1328 = vpop.f32.mrb[0].mxu0
        %v1329 = vadd.f32 0.0, %v1328
        %v1330 = vpop.f32.mrb[0].mxu0
        %v1331 = vpop.f32.mrb[0].mxu0
        %v1332 = vpop.f32.mrb[0].mxu0
        %1333 = vdwg.mxu0
        %v1334 = vpack.c.bf16 %v1329, %v1329
        %v1335 = vld [vmem:[%s1001] sm:$0xf]
        %v1336 = vld [vmem:[%s1001 + $0x4] sm:$0xf]
        %v1337 = vld [vmem:[%s1001 + $0x8] sm:$0xf]
        %v1338 = vld [vmem:[%s1001 + $0xc] sm:$0xf]
        %v1339 = vld [vmem:[%s836] sm:$0x1]
        %v1341 = vlaneseq
        %v1342 = vshrl.u32 %v1341, 7
        %v1343 = vsub.s32 0, %v1342
        %v1344 = vrot.slane %v1339, %v1343
        %v1350 = vunpack.c.l.b16 %v1335
        %v1351 = vunpack.c.l.b16 %v1336
        %v1352 = vunpack.c.l.b16 %v1337
        %v1353 = vunpack.c.l.b16 %v1338
        %v1354 = vpack.c.b16 %v1351, %v1350
        %v1355 = vpack.c.b16 %v1353, %v1352
        %v1359 = vsel %vm1054, %v1334, 0
        %1361 = vmatprep.subr.bf16.mxu0 0
        %1362 = vmatpush1.bf16.msra.mxu0 %v1354
        %1363 = vmatprep.subr.bf16.mxu0 0
        %1364 = vmatpush1.bf16.msra.mxu0 %v1355
        %1365 = vmatprep.subr.bf16.mxu0 0
        %1366 = vmatpush1.bf16.msra.mxu0 0
        %1367 = vmatprep.subr.bf16.mxu0 0
        %1368 = vmatpush1.bf16.msra.mxu0 0
        %1369 = vmatprep.subr.bf16.mxu0 0
        %1370 = vmatpush1.bf16.msra.mxu0 0
        %1371 = vmatprep.subr.bf16.mxu0 0
        %1372 = vmatpush1.bf16.msra.mxu0 0
        %1373 = vmatprep.subr.bf16.mxu0 0
        %1374 = vmatpush1.bf16.msra.mxu0 0
        %1375 = vmatprep.subr.bf16.mxu0 0
        %1376 = vmatpush1.bf16.msra.mxu0 0
        %1377 = vmatprep.subr.bf16.mxu0 0
        %1378 = vmatpush1.bf16.msra.mxu0 0
        %1379 = vmatprep.subr.bf16.mxu0 0
        %1380 = vmatpush1.bf16.msra.mxu0 0
        %1381 = vmatprep.subr.bf16.mxu0 0
        %1382 = vmatpush1.bf16.msra.mxu0 0
        %1383 = vmatprep.subr.bf16.mxu0 0
        %1384 = vmatpush1.bf16.msra.mxu0 0
        %1385 = vmatprep.subr.bf16.mxu0 0
        %1386 = vmatpush1.bf16.msra.mxu0 0
        %1387 = vmatprep.subr.bf16.mxu0 0
        %1388 = vmatpush1.bf16.msra.mxu0 0
        %1389 = vmatprep.subr.bf16.mxu0 0
        %1390 = vmatpush1.bf16.msra.mxu0 0
        %1391 = vmatprep.subr.bf16.mxu0 0
        %1392 = vmatpush1.bf16.msra.mxu0 0
        %1393 = vmatprep.mubr.bf16.mxu0 0
        %1394 = vmatmul.mubr.bf16.gmra.mrb[0].mxu0 %v1359
        %v1395 = vpop.f32.mrb[0].mxu0
        %v1396 = vadd.f32 %v1344, %v1395
        %v1397 = vpop.f32.mrb[0].mxu0
        %v1398 = vpop.f32.mrb[0].mxu0
        %v1399 = vpop.f32.mrb[0].mxu0
        %1400 = vdwg.mxu0
        %v1401 = vadd.f32 %v1029, %v1396
        %v1402 = vld [vmem:[%s844] sm:$0x1]
        %v1403 = vld [vmem:[%s852] sm:$0x1]
        %v1404 = vsel %vm1054, %v1401, 0.0
        %1405 = vadd.xlane.f32.xlu0 %v1404
        %v1406 = vpop.xlane.xlu0 %1405
        %v1407 = vrcp.pop 32.0
        %v1408 = vmul.f32 %v1406, %v1407
        %v1409 = vsub.f32 %v1401, %v1408
        %v1410 = vmul.f32 %v1409, %v1409
        %v1411 = vsel %vm1054, %v1410, 0.0
        %1412 = vadd.xlane.f32.xlu0 %v1411
        %v1413 = vpop.xlane.xlu0 %1412
        %v1414 = vmul.f32 %v1413, %v1407
        %v1415 = vadd.f32 %v1414, 1e-05
        %v1416 = vrsqrt.pop %v1415
        %v1417 = vmul.f32 %v1409, %v1416
        %v1419 = vlaneseq
        %v1420 = vshrl.u32 %v1419, 7
        %v1421 = vsub.s32 0, %v1420
        %v1422 = vrot.slane %v1402, %v1421
        %v1424 = vmul.f32 %v1417, %v1422
        %v1426 = vlaneseq
        %v1427 = vshrl.u32 %v1426, 7
        %v1428 = vsub.s32 0, %v1427
        %v1429 = vrot.slane %v1403, %v1428
        %v1431 = vadd.f32 %v1424, %v1429
        %v1432 = vpack.c.bf16 %v1431, %v1431
        %v1433 = vld [vmem:[%s1006] sm:$0xf]
        %v1434 = vld [vmem:[%s1006 + $0x4] sm:$0xf]
        %v1435 = vld [vmem:[%s1006 + $0x8] sm:$0xf]
        %v1436 = vld [vmem:[%s1006 + $0xc] sm:$0xf]
        %v1437 = vld [vmem:[%s860] sm:$0x1]
        %v1439 = vlaneseq
        %v1440 = vshrl.u32 %v1439, 7
        %v1441 = vsub.s32 0, %v1440
        %v1442 = vrot.slane %v1437, %v1441
        %v1448 = vunpack.c.l.b16 %v1433
        %v1449 = vunpack.c.l.b16 %v1434
        %v1450 = vunpack.c.l.b16 %v1435
        %v1451 = vunpack.c.l.b16 %v1436
        %v1452 = vpack.c.b16 %v1449, %v1448
        %v1453 = vpack.c.b16 %v1451, %v1450
        %v1457 = vsel %vm1054, %v1432, 0
        %1459 = vmatprep.subr.bf16.mxu0 0
        %1460 = vmatpush1.bf16.msra.mxu0 %v1452
        %1461 = vmatprep.subr.bf16.mxu0 0
        %1462 = vmatpush1.bf16.msra.mxu0 %v1453
        %1463 = vmatprep.subr.bf16.mxu0 0
        %1464 = vmatpush1.bf16.msra.mxu0 0
        %1465 = vmatprep.subr.bf16.mxu0 0
        %1466 = vmatpush1.bf16.msra.mxu0 0
        %1467 = vmatprep.subr.bf16.mxu0 0
        %1468 = vmatpush1.bf16.msra.mxu0 0
        %1469 = vmatprep.subr.bf16.mxu0 0
        %1470 = vmatpush1.bf16.msra.mxu0 0
        %1471 = vmatprep.subr.bf16.mxu0 0
        %1472 = vmatpush1.bf16.msra.mxu0 0
        %1473 = vmatprep.subr.bf16.mxu0 0
        %1474 = vmatpush1.bf16.msra.mxu0 0
        %1475 = vmatprep.subr.bf16.mxu0 0
        %1476 = vmatpush1.bf16.msra.mxu0 0
        %1477 = vmatprep.subr.bf16.mxu0 0
        %1478 = vmatpush1.bf16.msra.mxu0 0
        %1479 = vmatprep.subr.bf16.mxu0 0
        %1480 = vmatpush1.bf16.msra.mxu0 0
        %1481 = vmatprep.subr.bf16.mxu0 0
        %1482 = vmatpush1.bf16.msra.mxu0 0
        %1483 = vmatprep.subr.bf16.mxu0 0
        %1484 = vmatpush1.bf16.msra.mxu0 0
        %1485 = vmatprep.subr.bf16.mxu0 0
        %1486 = vmatpush1.bf16.msra.mxu0 0
        %1487 = vmatprep.subr.bf16.mxu0 0
        %1488 = vmatpush1.bf16.msra.mxu0 0
        %1489 = vmatprep.subr.bf16.mxu0 0
        %1490 = vmatpush1.bf16.msra.mxu0 0
        %1491 = vmatprep.mubr.bf16.mxu0 0
        %1492 = vmatmul.mubr.bf16.gmra.mrb[0].mxu0 %v1457
        %v1493 = vpop.f32.mrb[0].mxu0
        %v1494 = vadd.f32 %v1442, %v1493
        %v1495 = vpop.f32.mrb[0].mxu0
        %v1496 = vpop.f32.mrb[0].mxu0
        %v1497 = vpop.f32.mrb[0].mxu0
        %1498 = vdwg.mxu0
        %v1499 = vmax.f32 %v1494, 0.0
        %v1500 = vpack.c.bf16 %v1499, %v1499
        %v1501 = vld [vmem:[%s1011] sm:$0xf]
        %v1502 = vld [vmem:[%s1011 + $0x4] sm:$0xf]
        %v1503 = vld [vmem:[%s1011 + $0x8] sm:$0xf]
        %v1504 = vld [vmem:[%s1011 + $0xc] sm:$0xf]
        %v1505 = vld [vmem:[%s1011 + $0x10] sm:$0xf]
        %v1506 = vld [vmem:[%s1011 + $0x14] sm:$0xf]
        %v1507 = vld [vmem:[%s1011 + $0x18] sm:$0xf]
        %v1508 = vld [vmem:[%s1011 + $0x1c] sm:$0xf]
        %v1509 = vld [vmem:[%s1011 + $0x20] sm:$0xf]
        %v1510 = vld [vmem:[%s1011 + $0x24] sm:$0xf]
        %v1511 = vld [vmem:[%s1011 + $0x28] sm:$0xf]
        %v1512 = vld [vmem:[%s1011 + $0x2c] sm:$0xf]
        %v1513 = vld [vmem:[%s1011 + $0x30] sm:$0xf]
        %v1514 = vld [vmem:[%s1011 + $0x34] sm:$0xf]
        %v1515 = vld [vmem:[%s1011 + $0x38] sm:$0xf]
        %v1516 = vld [vmem:[%s1011 + $0x3c] sm:$0xf]
        %v1517 = vld [vmem:[%s1014] sm:$0x1]
        %v1519 = vlaneseq
        %v1520 = vshrl.u32 %v1519, 7
        %v1521 = vsub.s32 0, %v1520
        %v1522 = vrot.slane %v1517, %v1521
        %v1540 = vunpack.c.l.b16 %v1501
        %v1541 = vunpack.c.l.b16 %v1502
        %v1542 = vunpack.c.l.b16 %v1503
        %v1543 = vunpack.c.l.b16 %v1504
        %v1544 = vunpack.c.l.b16 %v1505
        %v1545 = vunpack.c.l.b16 %v1506
        %v1546 = vunpack.c.l.b16 %v1507
        %v1547 = vunpack.c.l.b16 %v1508
        %v1548 = vunpack.c.l.b16 %v1509
        %v1549 = vunpack.c.l.b16 %v1510
        %v1550 = vunpack.c.l.b16 %v1511
        %v1551 = vunpack.c.l.b16 %v1512
        %v1552 = vunpack.c.l.b16 %v1513
        %v1553 = vunpack.c.l.b16 %v1514
        %v1554 = vunpack.c.l.b16 %v1515
        %v1555 = vunpack.c.l.b16 %v1516
        %v1556 = vpack.c.b16 %v1541, %v1540
        %v1557 = vpack.c.b16 %v1543, %v1542
        %v1558 = vpack.c.b16 %v1545, %v1544
        %v1559 = vpack.c.b16 %v1547, %v1546
        %v1560 = vpack.c.b16 %v1549, %v1548
        %v1561 = vpack.c.b16 %v1551, %v1550
        %v1562 = vpack.c.b16 %v1553, %v1552
        %v1563 = vpack.c.b16 %v1555, %v1554
        %1572 = vmatprep.subr.bf16.mxu0 0
        %1573 = vmatpush1.bf16.msra.mxu0 %v1556
        %1574 = vmatprep.subr.bf16.mxu0 0
        %1575 = vmatpush1.bf16.msra.mxu0 %v1557
        %1576 = vmatprep.subr.bf16.mxu0 0
        %1577 = vmatpush1.bf16.msra.mxu0 %v1558
        %1578 = vmatprep.subr.bf16.mxu0 0
        %1579 = vmatpush1.bf16.msra.mxu0 %v1559
        %1580 = vmatprep.subr.bf16.mxu0 0
        %1581 = vmatpush1.bf16.msra.mxu0 %v1560
        %1582 = vmatprep.subr.bf16.mxu0 0
        %1583 = vmatpush1.bf16.msra.mxu0 %v1561
        %1584 = vmatprep.subr.bf16.mxu0 0
        %1585 = vmatpush1.bf16.msra.mxu0 %v1562
        %1586 = vmatprep.subr.bf16.mxu0 0
        %1587 = vmatpush1.bf16.msra.mxu0 %v1563
        %1588 = vmatprep.subr.bf16.mxu0 0
        %1589 = vmatpush1.bf16.msra.mxu0 0
        %1590 = vmatprep.subr.bf16.mxu0 0
        %1591 = vmatpush1.bf16.msra.mxu0 0
        %1592 = vmatprep.subr.bf16.mxu0 0
        %1593 = vmatpush1.bf16.msra.mxu0 0
        %1594 = vmatprep.subr.bf16.mxu0 0
        %1595 = vmatpush1.bf16.msra.mxu0 0
        %1596 = vmatprep.subr.bf16.mxu0 0
        %1597 = vmatpush1.bf16.msra.mxu0 0
        %1598 = vmatprep.subr.bf16.mxu0 0
        %1599 = vmatpush1.bf16.msra.mxu0 0
        %1600 = vmatprep.subr.bf16.mxu0 0
        %1601 = vmatpush1.bf16.msra.mxu0 0
        %1602 = vmatprep.subr.bf16.mxu0 0
        %1603 = vmatpush1.bf16.msra.mxu0 0
        %1604 = vmatprep.mubr.bf16.mxu0 0
        %1605 = vmatmul.mubr.bf16.gmra.mrb[0].mxu0 %v1500
        %v1606 = vpop.f32.mrb[0].mxu0
        %v1607 = vadd.f32 %v1522, %v1606
        %v1608 = vpop.f32.mrb[0].mxu0
        %v1609 = vpop.f32.mrb[0].mxu0
        %v1610 = vpop.f32.mrb[0].mxu0
        %1611 = vdwg.mxu0
        %v1612 = vadd.f32 %v1431, %v1607
        %v1613 = vld [vmem:[%s1017] sm:$0x1]
        %v1614 = vld [vmem:[%s1020] sm:$0x1]
        %v1615 = vsel %vm1054, %v1612, 0.0
        %1616 = vadd.xlane.f32.xlu0 %v1615
        %v1617 = vpop.xlane.xlu0 %1616
        %v1618 = vmul.f32 %v1617, %v1407
        %v1619 = vsub.f32 %v1612, %v1618
        %v1620 = vmul.f32 %v1619, %v1619
        %v1621 = vsel %vm1054, %v1620, 0.0
        %1622 = vadd.xlane.f32.xlu0 %v1621
        %v1623 = vpop.xlane.xlu0 %1622
        %v1624 = vmul.f32 %v1623, %v1407
        %v1625 = vadd.f32 %v1624, 1e-05
        %v1626 = vrsqrt.pop %v1625
        %v1627 = vmul.f32 %v1619, %v1626
        %v1629 = vlaneseq
        %v1630 = vshrl.u32 %v1629, 7
        %v1631 = vsub.s32 0, %v1630
        %v1632 = vrot.slane %v1613, %v1631
        %v1634 = vmul.f32 %v1627, %v1632
        %v1636 = vlaneseq
        %v1637 = vshrl.u32 %v1636, 7
        %v1638 = vsub.s32 0, %v1637
        %v1639 = vrot.slane %v1614, %v1638
        %v1641 = vadd.f32 %v1634, %v1639
        %1642 = vst.msk [vmem:[#allocation2] sm:$0xff] %vm1054, %v1641
        %p1643 = scmp.eq.s32.totalorder %s53, 2
        // Predicated region
        $region133: #{tpu_custom_call.1} parent=95 // pred_check
          %p1644 = pneg %p1643
        $region134: #{tpu_custom_call.1} parent=95 // pred_check_branch
          %1646 = sbr.rel (%p1644) target = $region136
        $region135: #{tpu_custom_call.1} parent=95 // pred_region
          %v1647 = vld [vmem:[%s17] sm:$0x1]
          %v1648 = vld [vmem:[%s18] sm:$0x1]
          %v1649 = vsel %vm1054, %v1641, 0.0
          %1650 = vadd.xlane.f32.xlu0 %v1649
          %v1651 = vpop.xlane.xlu0 %1650
          %v1652 = vmul.f32 %v1651, %v1407
          %v1653 = vsub.f32 %v1641, %v1652
          %v1654 = vmul.f32 %v1653, %v1653
          %v1655 = vsel %vm1054, %v1654, 0.0
          %1656 = vadd.xlane.f32.xlu0 %v1655
          %v1657 = vpop.xlane.xlu0 %1656
          %v1658 = vmul.f32 %v1657, %v1407
          %v1659 = vadd.f32 %v1658, 1e-05
          %v1660 = vrsqrt.pop %v1659
          %v1661 = vmul.f32 %v1653, %v1660
          %v1663 = vlaneseq
          %v1664 = vshrl.u32 %v1663, 7
          %v1665 = vsub.s32 0, %v1664
          %v1666 = vrot.slane %v1647, %v1665
          %v1668 = vmul.f32 %v1661, %v1666
          %v1670 = vlaneseq
          %v1671 = vshrl.u32 %v1670, 7
          %v1672 = vsub.s32 0, %v1671
          %v1673 = vrot.slane %v1648, %v1672
          %v1675 = vadd.f32 %v1668, %v1673
          %1676 = vst.msk [vmem:[%s981] sm:$0xff] %vm1054, %v1675
        $region136: #{tpu_custom_call.1} parent=95 // pred_fallthru
          _
        %s1677 = sand.u32 %s552, 1
        %s1678 = scalar_lea.sflag [#allocation5], %s1677
        %s1679 = sand.u32 %s552, 1
        %s1680 = smul.addr %s1679, 8
        %s1681 = scalar_lea.vmem [#allocation17], %s1680
        // Predicated region
        $region137: #{tpu_custom_call.1} parent=95 // pred_check
          %p1682 = pneg %p562
        $region138: #{tpu_custom_call.1} parent=95 // pred_check_branch
          %1684 = sbr.rel (%p1682) target = $region140
        $region139: #{tpu_custom_call.1} parent=95 // pred_region
          %s1686 = ssub.s32 128, 128
          %1687 = vsyncadd %s1678, %s1686
          %s1688 = smul.addr %s52, 128
          %s1689 = scalar_lea.hbm %s19, %s1688
          %s1691 = sshll.u32 %s1681, 4
          %s1692 = int_to_ptr.vmem [resolvable:$true] %s1691
          %1694 = dma.vmem_to_hbm [thread:$0]  %s1692, 128, %s1689, %s1678
        $region140: #{tpu_custom_call.1} parent=95 // pred_fallthru
          _
      $region96: #{tpu_custom_call.1} parent=5 // pred_fallthru
        _
      %p1695 = scmp.le.s32.totalorder 2, %s43
      // Predicated region
      $region141: #{tpu_custom_call.1} parent=5 // pred_check
        %p1696 = pneg %p1695
      $region142: #{tpu_custom_call.1} parent=5 // pred_check_branch
        %1698 = sbr.rel (%p1696) target = $region144
      $region143: #{tpu_custom_call.1} parent=5 // pred_region
        %s1699 = ssub.s32 %s43, 2
        // Predicated region
        $region145: #{tpu_custom_call.1} parent=143 // pred_check
          %p1700 = pneg %p568
        $region146: #{tpu_custom_call.1} parent=143 // pred_check_branch
          %1702 = sbr.rel (%p1700) target = $region148
        $region147: #{tpu_custom_call.1} parent=143 // pred_region
          %s1703 = sand.u32 %s553, 1
          %s1704 = scalar_lea.sflag [#allocation5], %s1703
          %s1705 = sand.u32 %s553, 1
          %s1706 = smul.addr %s1705, 8
          %s1707 = scalar_lea.vmem [#allocation17], %s1706
          %1708 = dma.done %s1704, 128
        $region148: #{tpu_custom_call.1} parent=143 // pred_fallthru
          _
      $region144: #{tpu_custom_call.1} parent=5 // pred_fallthru
        _
    $region6: #{tpu_custom_call.1} parent=1 // loop_footer
      %s47 = sadd.s32 1, %s43
    $region7: #{tpu_custom_call.1} parent=1 // loop_footer_branch
      %42 = sbr.rel target = $region3
    $region8: #{tpu_custom_call.1} parent=1 // loop_exit
      _
    %1709 = vsyncpa [#allocation4], 1
    %s1710 = scalar_lea.sflag [#allocation4], 1
    %1711 = vsyncpa %s1710, 1
    %1712 = vsyncpa [#allocation7], 1
    %s1713 = scalar_lea.sflag [#allocation7], 1
    %1714 = vsyncpa %s1713, 1
    %1715 = vsyncpa [#allocation10], 1
    %s1716 = scalar_lea.sflag [#allocation10], 1
    %1717 = vsyncpa %s1716, 1
    %1718 = vsyncpa [#allocation13], 1
    %s1719 = scalar_lea.sflag [#allocation13], 1
    %1720 = vsyncpa %s1719, 1
    %1721 = vsyncpa [#allocation16], 1
    %s1722 = scalar_lea.sflag [#allocation16], 1
    %1723 = vsyncpa %s1722, 1
    %1724 = vsyncpa [#allocation5], 1
    %s1725 = scalar_lea.sflag [#allocation5], 1
    %1726 = vsyncpa %s1725, 1

</llo_original>
